<compile_context>
chip_gen: v5e
topology: v5e:2x2
jax: 0.10.0
libtpu: 0.0.40
codegen_flags: <defaults>
</compile_context>

<pallas_src>
import jax
import jax.numpy as jnp
from jax import lax
from jax.experimental import pallas as pl
from jax.experimental.pallas import tpu as pltpu


def _round_up(a, b):
    return (a + b - 1) // b * b


def _make_basic_block_kernel(bblk, cp, m, wpad, l1, npad, ntot):
    # static tap lane offsets (all >= 0 thanks to the front margin of 2*m)
    offs = [m + (ky - 1) * wpad + (kx - 1) for ky in range(3) for kx in range(3)]

    def kernel(x_ref, w1_ref, s1_ref, b1_ref, w2_ref, s2_ref, b2_ref,
               mask1_ref, o_ref, xb_ref, y1_ref):
        # x_ref   : (bblk, cp, NTOT) f32   padded/flattened input
        # w*_ref  : (9, cp, cp)      bf16  per-tap weight matrices (t = ky*3+kx)
        # s*/b*   : (cp, 1)          f32   folded BN scale / shift
        # mask1   : (1, L1)          f32   interior-of-image mask for conv1 output
        # o_ref   : (bblk, cp, NPAD) f32   padded-plane output (wrapper crops)
        # xb_ref  : (cp, NTOT)       bf16  scratch: input cast once to bf16
        # y1_ref  : (cp, L1)         bf16  scratch: conv1 output (bn+relu+mask)

        # Hoisted epilogue constants (JAX does not CSE broadcast_in_dim).
        s1b = jnp.broadcast_to(s1_ref[...], (cp, l1))
        b1b = jnp.broadcast_to(b1_ref[...], (cp, l1))
        mkb = jnp.broadcast_to(mask1_ref[...], (cp, l1))
        s2b = jnp.broadcast_to(s2_ref[...], (cp, npad))
        b2b = jnp.broadcast_to(b2_ref[...], (cp, npad))

        for b in range(bblk):
            # Cast the whole block to bf16 once (vs 9 overlapping f32 loads + casts).
            xb_ref[...] = x_ref[b].astype(jnp.bfloat16)

            # ---- conv1: 9 accumulating MXU matmuls on static lane-shifted ref slices.
            acc1 = jnp.dot(w1_ref[0], xb_ref[:, offs[0]:offs[0] + l1],
                           preferred_element_type=jnp.float32)
            for t in range(1, 9):
                off = offs[t]
                acc1 = acc1 + jnp.dot(w1_ref[t], xb_ref[:, off:off + l1],
                                      preferred_element_type=jnp.float32)

            # bn1 (folded) + relu; mask zeroes padding ring / margins / lane pad so
            # y1 is directly the zero-padded conv2 input.  Materialize as a bf16 ref
            # to bound the f32 live range and let conv2 slice the ref.
            y1_ref[...] = (jnp.maximum(acc1 * s1b + b1b, 0.0) * mkb
                           ).astype(jnp.bfloat16)

            # ---- conv2: same 9-matmul accumulation on ref slices of y1.
            acc2 = jnp.dot(w2_ref[0], y1_ref[:, offs[0]:offs[0] + npad],
                           preferred_element_type=jnp.float32)
            for t in range(1, 9):
                off = offs[t]
                acc2 = acc2 + jnp.dot(w2_ref[t], y1_ref[:, off:off + npad],
                                      preferred_element_type=jnp.float32)

            # bn2 (folded) + residual + relu, all in f32 (identity is exact f32).
            identity = x_ref[b, :, 2 * m:2 * m + npad]      # original x (zero ring)
            o_ref[b] = jnp.maximum(acc2 * s2b + b2b + identity, 0.0)

    return kernel


def basic_block_pallas(x, params, eps=1e-5, batch_block=8):
    """x: (N, Cin, H, W) float32 (NCHW, PyTorch convention). Returns (N, Cout, H, W)."""
    n, cin, h, w = x.shape
    cout = params["w1"].shape[0]
    assert cin == cout, "stride=1 / downsample=None BasicBlock requires Cin == Cout"

    # --- static layout constants -------------------------------------------------
    cp = _round_up(max(cin, cout), 16)          # channel pad (bf16 sublane quantum)
    wpad, hpad = w + 2, h + 2
    npad0 = hpad * wpad                          # true padded-plane size
    m = wpad + 1                                 # margin so every tap offset >= 0
    npad = _round_up(npad0, 128)                 # lane-dense output length
    l1 = _round_up(npad + 2 * m, 128)            # conv1 output window length
    ntot = _round_up(l1 + 2 * m, 128)            # per-image lane length of x

    # batch elements per grid step; cap so the grid has >= 2 steps (pipeline
    # prefetch, and a prerequisite for both TCs on v7x).
    bblk = max(1, min(batch_block, n // 2)) if n >= 2 else 1
    nb = -(-n // bblk)
    npb = nb * bblk                              # padded batch

    # --- input layout: spatial pad on the small tensor, then ONE combined pad ----
    xsp = jnp.pad(x.astype(jnp.float32), ((0, 0), (0, 0), (1, 1), (1, 1)))
    xflat = xsp.reshape(n, cin, npad0)
    xflat = jnp.pad(xflat,
                    ((0, npb - n), (0, cp - cin), (2 * m, ntot - npad0 - 2 * m)))

    # interior mask over the conv1 output window (one image; broadcast in-kernel).
    q = jnp.arange(l1) - m                       # plane position
    row, col = q // wpad, q % wpad
    interior = ((q >= 0) & (q < npad0) &
                (row >= 1) & (row <= h) & (col >= 1) & (col <= w))
    mask1 = interior.astype(jnp.float32).reshape(1, l1)

    # fold BN (eval mode) into per-channel scale/shift, channel-padded to cp.
    def fold(g, b, mean, var):
        inv = g / jnp.sqrt(var + eps)
        s = jnp.zeros((cp,), jnp.float32).at[:cout].set(inv)
        t = jnp.zeros((cp,), jnp.float32).at[:cout].set(b - mean * inv)
        return s.reshape(cp, 1), t.reshape(cp, 1)

    s1, b1 = fold(params["gamma1"], params["beta1"], params["mean1"], params["var1"])
    s2, b2 = fold(params["gamma2"], params["beta2"], params["mean2"], params["var2"])

    # (Cout, Cin, 3, 3) -> (9, cp, cp) bf16 per-tap matrices, t = ky*3 + kx.
    def pack_w(wt, ci):
        wt = jnp.transpose(wt, (2, 3, 0, 1)).reshape(9, cout, ci)
        wpk = jnp.zeros((9, cp, cp), jnp.float32).at[:, :cout, :ci].set(wt)
        return wpk.astype(jnp.bfloat16)

    w1t = pack_w(params["w1"], cin)
    w2t = pack_w(params["w2"], cout)

    # --- cost estimate & VMEM budget ----------------------------------------------
    flops = 2 * npb * 9 * cp * cp * (l1 + npad)
    bytes_accessed = (npb * cp * (ntot + npad) * 4      # x in, out
                      + 2 * 9 * cp * cp * 2             # weights (bf16)
                      + l1 * 4 + 4 * cp * 4)            # mask, scale/shift
    ce = pl.CostEstimate(flops=flops, transcendentals=0,
                         bytes_accessed=bytes_accessed)

    vmem_need = (2 * bblk * cp * ntot * 4                # x block (double-buffered)
                 + 2 * bblk * cp * npad * 4              # out block (double-buffered)
                 + 2 * 2 * 9 * cp * cp * 2               # weights (double-buffered)
                 + 2 * (4 * cp * 4 + l1 * 4)             # scale/shift + mask
                 + cp * ntot * 2 + cp * l1 * 2)          # bf16 scratches
    vmem_limit = int(min(100 * 2**20, max(32 * 2**20, 2 * vmem_need)))

    kernel = _make_basic_block_kernel(bblk, cp, m, wpad, l1, npad, ntot)

    out_flat = pl.pallas_call(
        kernel,
        out_shape=jax.ShapeDtypeStruct((npb, cp, npad), jnp.float32),
        grid_spec=pltpu.PrefetchScalarGridSpec(
            num_scalar_prefetch=0,
            grid=(nb,),
            in_specs=[
                pl.BlockSpec((bblk, cp, ntot), lambda i: (i, 0, 0)),
                pl.BlockSpec((9, cp, cp), lambda i: (0, 0, 0)),
                pl.BlockSpec((cp, 1), lambda i: (0, 0)),
                pl.BlockSpec((cp, 1), lambda i: (0, 0)),
                pl.BlockSpec((9, cp, cp), lambda i: (0, 0, 0)),
                pl.BlockSpec((cp, 1), lambda i: (0, 0)),
                pl.BlockSpec((cp, 1), lambda i: (0, 0)),
                pl.BlockSpec((1, l1), lambda i: (0, 0)),
            ],
            out_specs=pl.BlockSpec((bblk, cp, npad), lambda i: (i, 0, 0)),
            scratch_shapes=[
                pltpu.VMEM((cp, ntot), jnp.bfloat16),   # x block cast to bf16
                pltpu.VMEM((cp, l1), jnp.bfloat16),     # y1 (conv2 input)
            ],
        ),
        compiler_params=pltpu.CompilerParams(
            dimension_semantics=("parallel",),
            vmem_limit_bytes=vmem_limit,
        ),
        cost_estimate=ce,
    )(xflat, w1t, s1, b1, w2t, s2, b2, mask1)

    out = out_flat[:n, :cout, :npad0].reshape(n, cout, hpad, wpad)[:, :, 1:h + 1, 1:w + 1]
    return out


def basic_block_reference(x, params, eps=1e-5):
    """Pure-JAX reference of the PyTorch forward (eval-mode BN, downsample=None)."""
    def conv3x3(a, w):
        return lax.conv_general_dilated(a, w, (1, 1), "SAME",
                                        dimension_numbers=("NCHW", "OIHW", "NCHW"))

    def bn(a, g, b, mean, var):
        inv = g / jnp.sqrt(var + eps)
        return a * inv[None, :, None, None] + (b - mean * inv)[None, :, None, None]

    y = jax.nn.relu(bn(conv3x3(x, params["w1"]),
                       params["gamma1"], params["beta1"], params["mean1"], params["var1"]))
    y = bn(conv3x3(y, params["w2"]),
           params["gamma2"], params["beta2"], params["mean2"], params["var2"])
    return jax.nn.relu(y + x)


if __name__ == "__main__":
    N, C, H, W = 2, 4, 16, 16

    key = jax.random.PRNGKey(0)
    ks = jax.random.split(key, 11)
    params = {
        "w1": 0.1 * jax.random.normal(ks[0], (C, C, 3, 3), jnp.float32),
        "gamma1": 1.0 + 0.1 * jax.random.normal(ks[1], (C,), jnp.float32),
        "beta1": 0.1 * jax.random.normal(ks[2], (C,), jnp.float32),
        "mean1": 0.1 * jax.random.normal(ks[3], (C,), jnp.float32),
        "var1": 0.5 + jnp.abs(jax.random.normal(ks[4], (C,), jnp.float32)),
        "w2": 0.1 * jax.random.normal(ks[5], (C, C, 3, 3), jnp.float32),
        "gamma2": 1.0 + 0.1 * jax.random.normal(ks[6], (C,), jnp.float32),
        "beta2": 0.1 * jax.random.normal(ks[7], (C,), jnp.float32),
        "mean2": 0.1 * jax.random.normal(ks[8], (C,), jnp.float32),
        "var2": 0.5 + jnp.abs(jax.random.normal(ks[9], (C,), jnp.float32)),
    }
    x = jax.random.normal(ks[10], (N, C, H, W), jnp.float32)

    out = basic_block_pallas(x, params)
    out = jax.block_until_ready(out)

    ref = basic_block_reference(x, params)
    assert out.shape == ref.shape == (N, C, H, W)
    # bf16 MXU operands with f32 accumulation -> loosened tolerance vs. pure-f32 ref.
    assert jnp.allclose(out, ref, atol=1e-2, rtol=1e-2), \
        f"max abs err = {jnp.max(jnp.abs(out - ref))}"

    print("KERNEL_OK")
</pallas_src>

<mosaic_0001>
module attributes {stable_mosaic.version = 11 : i64} {
  func.func @kernel(%arg0: i32, %arg1: memref<1x16x640xf32, #tpu.memory_space<vmem>>, %arg2: memref<9x16x16xbf16, #tpu.memory_space<vmem>>, %arg3: memref<16x1xf32, #tpu.memory_space<vmem>>, %arg4: memref<16x1xf32, #tpu.memory_space<vmem>>, %arg5: memref<9x16x16xbf16, #tpu.memory_space<vmem>>, %arg6: memref<16x1xf32, #tpu.memory_space<vmem>>, %arg7: memref<16x1xf32, #tpu.memory_space<vmem>>, %arg8: memref<1x512xf32, #tpu.memory_space<vmem>>, %arg9: memref<1x16x384xf32, #tpu.memory_space<vmem>>, %arg10: memref<16x640xbf16, #tpu.memory_space<vmem>>, %arg11: memref<16x512xbf16, #tpu.memory_space<vmem>>) attributes {dimension_semantics = [#tpu.dimension_semantics<parallel>], iteration_bounds = array<i64: 2>, scalar_prefetch = 0 : i64, scratch_operands = 2 : i64, tpu.core_type = #tpu.core_type<tc>, window_params = [{transform_indices = @transform_0, window_bounds = array<i64: 1, 16, 640>}, {pipeline_mode = #tpu.pipeline_mode<synchronous>, transform_indices = @transform_1, window_bounds = array<i64: 9, 16, 16>}, {pipeline_mode = #tpu.pipeline_mode<synchronous>, transform_indices = @transform_2, window_bounds = array<i64: 16, 1>}, {pipeline_mode = #tpu.pipeline_mode<synchronous>, transform_indices = @transform_3, window_bounds = array<i64: 16, 1>}, {pipeline_mode = #tpu.pipeline_mode<synchronous>, transform_indices = @transform_4, window_bounds = array<i64: 9, 16, 16>}, {pipeline_mode = #tpu.pipeline_mode<synchronous>, transform_indices = @transform_5, window_bounds = array<i64: 16, 1>}, {pipeline_mode = #tpu.pipeline_mode<synchronous>, transform_indices = @transform_6, window_bounds = array<i64: 16, 1>}, {pipeline_mode = #tpu.pipeline_mode<synchronous>, transform_indices = @transform_7, window_bounds = array<i64: 1, 512>}, {transform_indices = @transform_8, window_bounds = array<i64: 1, 16, 384>}]} {
    %c0 = arith.constant 0 : index
    %c0_0 = arith.constant 0 : index
    %0 = vector.load %arg3[%c0, %c0_0] : memref<16x1xf32, #tpu.memory_space<vmem>>, vector<16x1xf32>
    %1 = vector.shape_cast %0 : vector<16x1xf32> to vector<16x1xf32>
    %2 = vector.broadcast %1 : vector<16x1xf32> to vector<16x512xf32>
    %c0_1 = arith.constant 0 : index
    %c0_2 = arith.constant 0 : index
    %3 = vector.load %arg4[%c0_1, %c0_2] : memref<16x1xf32, #tpu.memory_space<vmem>>, vector<16x1xf32>
    %4 = vector.shape_cast %3 : vector<16x1xf32> to vector<16x1xf32>
    %5 = vector.broadcast %4 : vector<16x1xf32> to vector<16x512xf32>
    %c0_3 = arith.constant 0 : index
    %c0_4 = arith.constant 0 : index
    %6 = vector.load %arg8[%c0_3, %c0_4] : memref<1x512xf32, #tpu.memory_space<vmem>>, vector<1x512xf32>
    %7 = vector.shape_cast %6 : vector<1x512xf32> to vector<1x512xf32>
    %8 = vector.broadcast %7 : vector<1x512xf32> to vector<16x512xf32>
    %c0_5 = arith.constant 0 : index
    %c0_6 = arith.constant 0 : index
    %9 = vector.load %arg6[%c0_5, %c0_6] : memref<16x1xf32, #tpu.memory_space<vmem>>, vector<16x1xf32>
    %10 = vector.shape_cast %9 : vector<16x1xf32> to vector<16x1xf32>
    %11 = vector.broadcast %10 : vector<16x1xf32> to vector<16x384xf32>
    %c0_7 = arith.constant 0 : index
    %c0_8 = arith.constant 0 : index
    %12 = vector.load %arg7[%c0_7, %c0_8] : memref<16x1xf32, #tpu.memory_space<vmem>>, vector<16x1xf32>
    %13 = vector.shape_cast %12 : vector<16x1xf32> to vector<16x1xf32>
    %14 = vector.broadcast %13 : vector<16x1xf32> to vector<16x384xf32>
    %c0_9 = arith.constant 0 : index
    %c0_10 = arith.constant 0 : index
    %c0_11 = arith.constant 0 : index
    %15 = vector.load %arg1[%c0_9, %c0_10, %c0_11] : memref<1x16x640xf32, #tpu.memory_space<vmem>>, vector<1x16x640xf32>
    %16 = vector.shape_cast %15 : vector<1x16x640xf32> to vector<16x640xf32>
    %17 = arith.truncf %16 : vector<16x640xf32> to vector<16x640xbf16>
    %c0_12 = arith.constant 0 : index
    %c0_13 = arith.constant 0 : index
    %18 = vector.load %arg10[%c0_12, %c0_13] : memref<16x640xbf16, #tpu.memory_space<vmem>>, vector<16x640xbf16>
    tpu.vector_store %arg10[%c0_12, %c0_13], %17 {strides = array<i32>} : memref<16x640xbf16, #tpu.memory_space<vmem>>, vector<16x640xbf16>,
    %c0_14 = arith.constant 0 : index
    %c0_15 = arith.constant 0 : index
    %c0_16 = arith.constant 0 : index
    %19 = vector.load %arg2[%c0_14, %c0_15, %c0_16] : memref<9x16x16xbf16, #tpu.memory_space<vmem>>, vector<1x16x16xbf16>
    %20 = vector.shape_cast %19 : vector<1x16x16xbf16> to vector<16x16xbf16>
    %c0_17 = arith.constant 0 : index
    %c0_18 = arith.constant 0 : index
    %21 = vector.load %arg10[%c0_17, %c0_18] : memref<16x640xbf16, #tpu.memory_space<vmem>>, vector<16x512xbf16>
    %cst = arith.constant dense<0.000000e+00> : vector<16x512xf32>
    %22 = tpu.matmul %20, %21, %cst {dimension_numbers = #tpu.dot_dimension_numbers<[1], [0], [0], [1], [0, 0, 1, 1], [], []>} : vector<16x16xbf16>, vector<16x512xbf16>, vector<16x512xf32> -> vector<16x512xf32>
    %c1 = arith.constant 1 : index
    %c0_19 = arith.constant 0 : index
    %c0_20 = arith.constant 0 : index
    %23 = vector.load %arg2[%c1, %c0_19, %c0_20] : memref<9x16x16xbf16, #tpu.memory_space<vmem>>, vector<1x16x16xbf16>
    %24 = vector.shape_cast %23 : vector<1x16x16xbf16> to vector<16x16xbf16>
    %c0_21 = arith.constant 0 : index
    %c1_22 = arith.constant 1 : index
    %25 = vector.load %arg10[%c0_21, %c1_22] : memref<16x640xbf16, #tpu.memory_space<vmem>>, vector<16x512xbf16>
    %cst_23 = arith.constant dense<0.000000e+00> : vector<16x512xf32>
    %26 = tpu.matmul %24, %25, %cst_23 {dimension_numbers = #tpu.dot_dimension_numbers<[1], [0], [0], [1], [0, 0, 1, 1], [], []>} : vector<16x16xbf16>, vector<16x512xbf16>, vector<16x512xf32> -> vector<16x512xf32>
    %27 = arith.addf %22, %26 : vector<16x512xf32>
    %c2 = arith.constant 2 : index
    %c0_24 = arith.constant 0 : index
    %c0_25 = arith.constant 0 : index
    %28 = vector.load %arg2[%c2, %c0_24, %c0_25] : memref<9x16x16xbf16, #tpu.memory_space<vmem>>, vector<1x16x16xbf16>
    %29 = vector.shape_cast %28 : vector<1x16x16xbf16> to vector<16x16xbf16>
    %c0_26 = arith.constant 0 : index
    %c2_27 = arith.constant 2 : index
    %30 = vector.load %arg10[%c0_26, %c2_27] : memref<16x640xbf16, #tpu.memory_space<vmem>>, vector<16x512xbf16>
    %cst_28 = arith.constant dense<0.000000e+00> : vector<16x512xf32>
    %31 = tpu.matmul %29, %30, %cst_28 {dimension_numbers = #tpu.dot_dimension_numbers<[1], [0], [0], [1], [0, 0, 1, 1], [], []>} : vector<16x16xbf16>, vector<16x512xbf16>, vector<16x512xf32> -> vector<16x512xf32>
    %32 = arith.addf %27, %31 : vector<16x512xf32>
    %c3 = arith.constant 3 : index
    %c0_29 = arith.constant 0 : index
    %c0_30 = arith.constant 0 : index
    %33 = vector.load %arg2[%c3, %c0_29, %c0_30] : memref<9x16x16xbf16, #tpu.memory_space<vmem>>, vector<1x16x16xbf16>
    %34 = vector.shape_cast %33 : vector<1x16x16xbf16> to vector<16x16xbf16>
    %c0_31 = arith.constant 0 : index
    %c18 = arith.constant 18 : index
    %35 = vector.load %arg10[%c0_31, %c18] : memref<16x640xbf16, #tpu.memory_space<vmem>>, vector<16x512xbf16>
    %cst_32 = arith.constant dense<0.000000e+00> : vector<16x512xf32>
    %36 = tpu.matmul %34, %35, %cst_32 {dimension_numbers = #tpu.dot_dimension_numbers<[1], [0], [0], [1], [0, 0, 1, 1], [], []>} : vector<16x16xbf16>, vector<16x512xbf16>, vector<16x512xf32> -> vector<16x512xf32>
    %37 = arith.addf %32, %36 : vector<16x512xf32>
    %c4 = arith.constant 4 : index
    %c0_33 = arith.constant 0 : index
    %c0_34 = arith.constant 0 : index
    %38 = vector.load %arg2[%c4, %c0_33, %c0_34] : memref<9x16x16xbf16, #tpu.memory_space<vmem>>, vector<1x16x16xbf16>
    %39 = vector.shape_cast %38 : vector<1x16x16xbf16> to vector<16x16xbf16>
    %c0_35 = arith.constant 0 : index
    %c19 = arith.constant 19 : index
    %40 = vector.load %arg10[%c0_35, %c19] : memref<16x640xbf16, #tpu.memory_space<vmem>>, vector<16x512xbf16>
    %cst_36 = arith.constant dense<0.000000e+00> : vector<16x512xf32>
    %41 = tpu.matmul %39, %40, %cst_36 {dimension_numbers = #tpu.dot_dimension_numbers<[1], [0], [0], [1], [0, 0, 1, 1], [], []>} : vector<16x16xbf16>, vector<16x512xbf16>, vector<16x512xf32> -> vector<16x512xf32>
    %42 = arith.addf %37, %41 : vector<16x512xf32>
    %c5 = arith.constant 5 : index
    %c0_37 = arith.constant 0 : index
    %c0_38 = arith.constant 0 : index
    %43 = vector.load %arg2[%c5, %c0_37, %c0_38] : memref<9x16x16xbf16, #tpu.memory_space<vmem>>, vector<1x16x16xbf16>
    %44 = vector.shape_cast %43 : vector<1x16x16xbf16> to vector<16x16xbf16>
    %c0_39 = arith.constant 0 : index
    %c20 = arith.constant 20 : index
    %45 = vector.load %arg10[%c0_39, %c20] : memref<16x640xbf16, #tpu.memory_space<vmem>>, vector<16x512xbf16>
    %cst_40 = arith.constant dense<0.000000e+00> : vector<16x512xf32>
    %46 = tpu.matmul %44, %45, %cst_40 {dimension_numbers = #tpu.dot_dimension_numbers<[1], [0], [0], [1], [0, 0, 1, 1], [], []>} : vector<16x16xbf16>, vector<16x512xbf16>, vector<16x512xf32> -> vector<16x512xf32>
    %47 = arith.addf %42, %46 : vector<16x512xf32>
    %c6 = arith.constant 6 : index
    %c0_41 = arith.constant 0 : index
    %c0_42 = arith.constant 0 : index
    %48 = vector.load %arg2[%c6, %c0_41, %c0_42] : memref<9x16x16xbf16, #tpu.memory_space<vmem>>, vector<1x16x16xbf16>
    %49 = vector.shape_cast %48 : vector<1x16x16xbf16> to vector<16x16xbf16>
    %c0_43 = arith.constant 0 : index
    %c36 = arith.constant 36 : index
    %50 = vector.load %arg10[%c0_43, %c36] : memref<16x640xbf16, #tpu.memory_space<vmem>>, vector<16x512xbf16>
    %cst_44 = arith.constant dense<0.000000e+00> : vector<16x512xf32>
    %51 = tpu.matmul %49, %50, %cst_44 {dimension_numbers = #tpu.dot_dimension_numbers<[1], [0], [0], [1], [0, 0, 1, 1], [], []>} : vector<16x16xbf16>, vector<16x512xbf16>, vector<16x512xf32> -> vector<16x512xf32>
    %52 = arith.addf %47, %51 : vector<16x512xf32>
    %c7 = arith.constant 7 : index
    %c0_45 = arith.constant 0 : index
    %c0_46 = arith.constant 0 : index
    %53 = vector.load %arg2[%c7, %c0_45, %c0_46] : memref<9x16x16xbf16, #tpu.memory_space<vmem>>, vector<1x16x16xbf16>
    %54 = vector.shape_cast %53 : vector<1x16x16xbf16> to vector<16x16xbf16>
    %c0_47 = arith.constant 0 : index
    %c37 = arith.constant 37 : index
    %55 = vector.load %arg10[%c0_47, %c37] : memref<16x640xbf16, #tpu.memory_space<vmem>>, vector<16x512xbf16>
    %cst_48 = arith.constant dense<0.000000e+00> : vector<16x512xf32>
    %56 = tpu.matmul %54, %55, %cst_48 {dimension_numbers = #tpu.dot_dimension_numbers<[1], [0], [0], [1], [0, 0, 1, 1], [], []>} : vector<16x16xbf16>, vector<16x512xbf16>, vector<16x512xf32> -> vector<16x512xf32>
    %57 = arith.addf %52, %56 : vector<16x512xf32>
    %c8 = arith.constant 8 : index
    %c0_49 = arith.constant 0 : index
    %c0_50 = arith.constant 0 : index
    %58 = vector.load %arg2[%c8, %c0_49, %c0_50] : memref<9x16x16xbf16, #tpu.memory_space<vmem>>, vector<1x16x16xbf16>
    %59 = vector.shape_cast %58 : vector<1x16x16xbf16> to vector<16x16xbf16>
    %c0_51 = arith.constant 0 : index
    %c38 = arith.constant 38 : index
    %60 = vector.load %arg10[%c0_51, %c38] : memref<16x640xbf16, #tpu.memory_space<vmem>>, vector<16x512xbf16>
    %cst_52 = arith.constant dense<0.000000e+00> : vector<16x512xf32>
    %61 = tpu.matmul %59, %60, %cst_52 {dimension_numbers = #tpu.dot_dimension_numbers<[1], [0], [0], [1], [0, 0, 1, 1], [], []>} : vector<16x16xbf16>, vector<16x512xbf16>, vector<16x512xf32> -> vector<16x512xf32>
    %62 = arith.addf %57, %61 : vector<16x512xf32>
    %63 = arith.mulf %62, %2 : vector<16x512xf32>
    %64 = arith.addf %63, %5 : vector<16x512xf32>
    %cst_53 = arith.constant 0.000000e+00 : f32
    %65 = vector.broadcast %cst_53 : f32 to vector<16x512xf32>
    %66 = arith.maximumf %64, %65 : vector<16x512xf32>
    %67 = arith.mulf %66, %8 : vector<16x512xf32>
    %68 = arith.truncf %67 : vector<16x512xf32> to vector<16x512xbf16>
    %c0_54 = arith.constant 0 : index
    %c0_55 = arith.constant 0 : index
    %69 = vector.load %arg11[%c0_54, %c0_55] : memref<16x512xbf16, #tpu.memory_space<vmem>>, vector<16x512xbf16>
    tpu.vector_store %arg11[%c0_54, %c0_55], %68 {strides = array<i32>} : memref<16x512xbf16, #tpu.memory_space<vmem>>, vector<16x512xbf16>,
    %c0_56 = arith.constant 0 : index
    %c0_57 = arith.constant 0 : index
    %c0_58 = arith.constant 0 : index
    %70 = vector.load %arg5[%c0_56, %c0_57, %c0_58] : memref<9x16x16xbf16, #tpu.memory_space<vmem>>, vector<1x16x16xbf16>
    %71 = vector.shape_cast %70 : vector<1x16x16xbf16> to vector<16x16xbf16>
    %c0_59 = arith.constant 0 : index
    %c0_60 = arith.constant 0 : index
    %72 = vector.load %arg11[%c0_59, %c0_60] : memref<16x512xbf16, #tpu.memory_space<vmem>>, vector<16x384xbf16>
    %cst_61 = arith.constant dense<0.000000e+00> : vector<16x384xf32>
    %73 = tpu.matmul %71, %72, %cst_61 {dimension_numbers = #tpu.dot_dimension_numbers<[1], [0], [0], [1], [0, 0, 1, 1], [], []>} : vector<16x16xbf16>, vector<16x384xbf16>, vector<16x384xf32> -> vector<16x384xf32>
    %c1_62 = arith.constant 1 : index
    %c0_63 = arith.constant 0 : index
    %c0_64 = arith.constant 0 : index
    %74 = vector.load %arg5[%c1_62, %c0_63, %c0_64] : memref<9x16x16xbf16, #tpu.memory_space<vmem>>, vector<1x16x16xbf16>
    %75 = vector.shape_cast %74 : vector<1x16x16xbf16> to vector<16x16xbf16>
    %c0_65 = arith.constant 0 : index
    %c1_66 = arith.constant 1 : index
    %76 = vector.load %arg11[%c0_65, %c1_66] : memref<16x512xbf16, #tpu.memory_space<vmem>>, vector<16x384xbf16>
    %cst_67 = arith.constant dense<0.000000e+00> : vector<16x384xf32>
    %77 = tpu.matmul %75, %76, %cst_67 {dimension_numbers = #tpu.dot_dimension_numbers<[1], [0], [0], [1], [0, 0, 1, 1], [], []>} : vector<16x16xbf16>, vector<16x384xbf16>, vector<16x384xf32> -> vector<16x384xf32>
    %78 = arith.addf %73, %77 : vector<16x384xf32>
    %c2_68 = arith.constant 2 : index
    %c0_69 = arith.constant 0 : index
    %c0_70 = arith.constant 0 : index
    %79 = vector.load %arg5[%c2_68, %c0_69, %c0_70] : memref<9x16x16xbf16, #tpu.memory_space<vmem>>, vector<1x16x16xbf16>
    %80 = vector.shape_cast %79 : vector<1x16x16xbf16> to vector<16x16xbf16>
    %c0_71 = arith.constant 0 : index
    %c2_72 = arith.constant 2 : index
    %81 = vector.load %arg11[%c0_71, %c2_72] : memref<16x512xbf16, #tpu.memory_space<vmem>>, vector<16x384xbf16>
    %cst_73 = arith.constant dense<0.000000e+00> : vector<16x384xf32>
    %82 = tpu.matmul %80, %81, %cst_73 {dimension_numbers = #tpu.dot_dimension_numbers<[1], [0], [0], [1], [0, 0, 1, 1], [], []>} : vector<16x16xbf16>, vector<16x384xbf16>, vector<16x384xf32> -> vector<16x384xf32>
    %83 = arith.addf %78, %82 : vector<16x384xf32>
    %c3_74 = arith.constant 3 : index
    %c0_75 = arith.constant 0 : index
    %c0_76 = arith.constant 0 : index
    %84 = vector.load %arg5[%c3_74, %c0_75, %c0_76] : memref<9x16x16xbf16, #tpu.memory_space<vmem>>, vector<1x16x16xbf16>
    %85 = vector.shape_cast %84 : vector<1x16x16xbf16> to vector<16x16xbf16>
    %c0_77 = arith.constant 0 : index
    %c18_78 = arith.constant 18 : index
    %86 = vector.load %arg11[%c0_77, %c18_78] : memref<16x512xbf16, #tpu.memory_space<vmem>>, vector<16x384xbf16>
    %cst_79 = arith.constant dense<0.000000e+00> : vector<16x384xf32>
    %87 = tpu.matmul %85, %86, %cst_79 {dimension_numbers = #tpu.dot_dimension_numbers<[1], [0], [0], [1], [0, 0, 1, 1], [], []>} : vector<16x16xbf16>, vector<16x384xbf16>, vector<16x384xf32> -> vector<16x384xf32>
    %88 = arith.addf %83, %87 : vector<16x384xf32>
    %c4_80 = arith.constant 4 : index
    %c0_81 = arith.constant 0 : index
    %c0_82 = arith.constant 0 : index
    %89 = vector.load %arg5[%c4_80, %c0_81, %c0_82] : memref<9x16x16xbf16, #tpu.memory_space<vmem>>, vector<1x16x16xbf16>
    %90 = vector.shape_cast %89 : vector<1x16x16xbf16> to vector<16x16xbf16>
    %c0_83 = arith.constant 0 : index
    %c19_84 = arith.constant 19 : index
    %91 = vector.load %arg11[%c0_83, %c19_84] : memref<16x512xbf16, #tpu.memory_space<vmem>>, vector<16x384xbf16>
    %cst_85 = arith.constant dense<0.000000e+00> : vector<16x384xf32>
    %92 = tpu.matmul %90, %91, %cst_85 {dimension_numbers = #tpu.dot_dimension_numbers<[1], [0], [0], [1], [0, 0, 1, 1], [], []>} : vector<16x16xbf16>, vector<16x384xbf16>, vector<16x384xf32> -> vector<16x384xf32>
    %93 = arith.addf %88, %92 : vector<16x384xf32>
    %c5_86 = arith.constant 5 : index
    %c0_87 = arith.constant 0 : index
    %c0_88 = arith.constant 0 : index
    %94 = vector.load %arg5[%c5_86, %c0_87, %c0_88] : memref<9x16x16xbf16, #tpu.memory_space<vmem>>, vector<1x16x16xbf16>
    %95 = vector.shape_cast %94 : vector<1x16x16xbf16> to vector<16x16xbf16>
    %c0_89 = arith.constant 0 : index
    %c20_90 = arith.constant 20 : index
    %96 = vector.load %arg11[%c0_89, %c20_90] : memref<16x512xbf16, #tpu.memory_space<vmem>>, vector<16x384xbf16>
    %cst_91 = arith.constant dense<0.000000e+00> : vector<16x384xf32>
    %97 = tpu.matmul %95, %96, %cst_91 {dimension_numbers = #tpu.dot_dimension_numbers<[1], [0], [0], [1], [0, 0, 1, 1], [], []>} : vector<16x16xbf16>, vector<16x384xbf16>, vector<16x384xf32> -> vector<16x384xf32>
    %98 = arith.addf %93, %97 : vector<16x384xf32>
    %c6_92 = arith.constant 6 : index
    %c0_93 = arith.constant 0 : index
    %c0_94 = arith.constant 0 : index
    %99 = vector.load %arg5[%c6_92, %c0_93, %c0_94] : memref<9x16x16xbf16, #tpu.memory_space<vmem>>, vector<1x16x16xbf16>
    %100 = vector.shape_cast %99 : vector<1x16x16xbf16> to vector<16x16xbf16>
    %c0_95 = arith.constant 0 : index
    %c36_96 = arith.constant 36 : index
    %101 = vector.load %arg11[%c0_95, %c36_96] : memref<16x512xbf16, #tpu.memory_space<vmem>>, vector<16x384xbf16>
    %cst_97 = arith.constant dense<0.000000e+00> : vector<16x384xf32>
    %102 = tpu.matmul %100, %101, %cst_97 {dimension_numbers = #tpu.dot_dimension_numbers<[1], [0], [0], [1], [0, 0, 1, 1], [], []>} : vector<16x16xbf16>, vector<16x384xbf16>, vector<16x384xf32> -> vector<16x384xf32>
    %103 = arith.addf %98, %102 : vector<16x384xf32>
    %c7_98 = arith.constant 7 : index
    %c0_99 = arith.constant 0 : index
    %c0_100 = arith.constant 0 : index
    %104 = vector.load %arg5[%c7_98, %c0_99, %c0_100] : memref<9x16x16xbf16, #tpu.memory_space<vmem>>, vector<1x16x16xbf16>
    %105 = vector.shape_cast %104 : vector<1x16x16xbf16> to vector<16x16xbf16>
    %c0_101 = arith.constant 0 : index
    %c37_102 = arith.constant 37 : index
    %106 = vector.load %arg11[%c0_101, %c37_102] : memref<16x512xbf16, #tpu.memory_space<vmem>>, vector<16x384xbf16>
    %cst_103 = arith.constant dense<0.000000e+00> : vector<16x384xf32>
    %107 = tpu.matmul %105, %106, %cst_103 {dimension_numbers = #tpu.dot_dimension_numbers<[1], [0], [0], [1], [0, 0, 1, 1], [], []>} : vector<16x16xbf16>, vector<16x384xbf16>, vector<16x384xf32> -> vector<16x384xf32>
    %108 = arith.addf %103, %107 : vector<16x384xf32>
    %c8_104 = arith.constant 8 : index
    %c0_105 = arith.constant 0 : index
    %c0_106 = arith.constant 0 : index
    %109 = vector.load %arg5[%c8_104, %c0_105, %c0_106] : memref<9x16x16xbf16, #tpu.memory_space<vmem>>, vector<1x16x16xbf16>
    %110 = vector.shape_cast %109 : vector<1x16x16xbf16> to vector<16x16xbf16>
    %c0_107 = arith.constant 0 : index
    %c38_108 = arith.constant 38 : index
    %111 = vector.load %arg11[%c0_107, %c38_108] : memref<16x512xbf16, #tpu.memory_space<vmem>>, vector<16x384xbf16>
    %cst_109 = arith.constant dense<0.000000e+00> : vector<16x384xf32>
    %112 = tpu.matmul %110, %111, %cst_109 {dimension_numbers = #tpu.dot_dimension_numbers<[1], [0], [0], [1], [0, 0, 1, 1], [], []>} : vector<16x16xbf16>, vector<16x384xbf16>, vector<16x384xf32> -> vector<16x384xf32>
    %113 = arith.addf %108, %112 : vector<16x384xf32>
    %c0_110 = arith.constant 0 : index
    %c0_111 = arith.constant 0 : index
    %c38_112 = arith.constant 38 : index
    %114 = vector.load %arg1[%c0_110, %c0_111, %c38_112] : memref<1x16x640xf32, #tpu.memory_space<vmem>>, vector<1x16x384xf32>
    %115 = vector.shape_cast %114 : vector<1x16x384xf32> to vector<16x384xf32>
    %116 = arith.mulf %113, %11 : vector<16x384xf32>
    %117 = arith.addf %116, %14 : vector<16x384xf32>
    %118 = arith.addf %117, %115 : vector<16x384xf32>
    %cst_113 = arith.constant 0.000000e+00 : f32
    %119 = vector.broadcast %cst_113 : f32 to vector<16x384xf32>
    %120 = arith.maximumf %118, %119 : vector<16x384xf32>
    %c0_114 = arith.constant 0 : index
    %c0_115 = arith.constant 0 : index
    %c0_116 = arith.constant 0 : index
    %121 = vector.load %arg9[%c0_114, %c0_115, %c0_116] : memref<1x16x384xf32, #tpu.memory_space<vmem>>, vector<1x16x384xf32>
    %122 = vector.shape_cast %121 : vector<1x16x384xf32> to vector<16x384xf32>
    %123 = vector.shape_cast %120 : vector<16x384xf32> to vector<1x16x384xf32>
    tpu.vector_store %arg9[%c0_114, %c0_115, %c0_116], %123 {strides = array<i32>} : memref<1x16x384xf32, #tpu.memory_space<vmem>>, vector<1x16x384xf32>,
    return
  }
  func.func @transform_0(%arg0: i32) -> (i32, i32, i32) {
    %c0_i32 = arith.constant 0 : i32
    %c0_i32_0 = arith.constant 0 : i32
    %c0_i32_1 = arith.constant 0 : i32
    return %arg0, %c0_i32, %c0_i32_0 : i32, i32, i32
  }
  func.func @transform_1(%arg0: i32) -> (i32, i32, i32) {
    %c0_i32 = arith.constant 0 : i32
    %c0_i32_0 = arith.constant 0 : i32
    %c0_i32_1 = arith.constant 0 : i32
    %c0_i32_2 = arith.constant 0 : i32
    return %c0_i32, %c0_i32_0, %c0_i32_1 : i32, i32, i32
  }
  func.func @transform_2(%arg0: i32) -> (i32, i32) {
    %c0_i32 = arith.constant 0 : i32
    %c0_i32_0 = arith.constant 0 : i32
    %c0_i32_1 = arith.constant 0 : i32
    return %c0_i32, %c0_i32_0 : i32, i32
  }
  func.func @transform_3(%arg0: i32) -> (i32, i32) {
    %c0_i32 = arith.constant 0 : i32
    %c0_i32_0 = arith.constant 0 : i32
    %c0_i32_1 = arith.constant 0 : i32
    return %c0_i32, %c0_i32_0 : i32, i32
  }
  func.func @transform_4(%arg0: i32) -> (i32, i32, i32) {
    %c0_i32 = arith.constant 0 : i32
    %c0_i32_0 = arith.constant 0 : i32
    %c0_i32_1 = arith.constant 0 : i32
    %c0_i32_2 = arith.constant 0 : i32
    return %c0_i32, %c0_i32_0, %c0_i32_1 : i32, i32, i32
  }
  func.func @transform_5(%arg0: i32) -> (i32, i32) {
    %c0_i32 = arith.constant 0 : i32
    %c0_i32_0 = arith.constant 0 : i32
    %c0_i32_1 = arith.constant 0 : i32
    return %c0_i32, %c0_i32_0 : i32, i32
  }
  func.func @transform_6(%arg0: i32) -> (i32, i32) {
    %c0_i32 = arith.constant 0 : i32
    %c0_i32_0 = arith.constant 0 : i32
    %c0_i32_1 = arith.constant 0 : i32
    return %c0_i32, %c0_i32_0 : i32, i32
  }
  func.func @transform_7(%arg0: i32) -> (i32, i32) {
    %c0_i32 = arith.constant 0 : i32
    %c0_i32_0 = arith.constant 0 : i32
    %c0_i32_1 = arith.constant 0 : i32
    return %c0_i32, %c0_i32_0 : i32, i32
  }
  func.func @transform_8(%arg0: i32) -> (i32, i32, i32) {
    %c0_i32 = arith.constant 0 : i32
    %c0_i32_0 = arith.constant 0 : i32
    %c0_i32_1 = arith.constant 0 : i32
    return %arg0, %c0_i32, %c0_i32_0 : i32, i32, i32
  }
}

</mosaic_0001>

<llo_original>
// kernel: tpu_custom_call.1
$region0: #{tpu_custom_call.1}
  #allocation0 [shape = 'u32[]', space=smem, size = 0x4, offset = 0x4, fixed_abs, tag = 'smem constant byte address 0x4 - core index']
  #allocation1 [shape = 'u32[72,128]{1,0:T(1,128)}', space=vmem, size = 0x9000, scoped, tag = 'internal scratch']
  #allocation2 [shape = 'bf16[16,640]{1,0:T(8,128)(2,1)}', space=vmem, size = 0x5000, scoped, tag = 'scratch operand']
  #allocation3 [shape = 'bf16[16,512]{1,0:T(8,128)(2,1)}', space=vmem, size = 0x4000, scoped, tag = 'scratch operand']
  %s0 = inlined_call_operand.hbm [shape: f32[2,16,640], index: 0, kind: input, shape index: {}]
  %s1 = inlined_call_operand.hbm [shape: bf16[9,16,16], index: 1, kind: input, shape index: {}]
  %s2 = inlined_call_operand.vmem [shape: f32[16,1], index: 2, kind: input, shape index: {}]
  %s3 = inlined_call_operand.vmem [shape: f32[16,1], index: 3, kind: input, shape index: {}]
  %s4 = inlined_call_operand.hbm [shape: bf16[9,16,16], index: 4, kind: input, shape index: {}]
  %s5 = inlined_call_operand.vmem [shape: f32[16,1], index: 5, kind: input, shape index: {}]
  %s6 = inlined_call_operand.vmem [shape: f32[16,1], index: 6, kind: input, shape index: {}]
  %s7 = inlined_call_operand.vmem [shape: f32[1,512], index: 7, kind: input, shape index: {}]
  %s8 = inlined_call_operand.hbm [shape: f32[2,16,384], index: 8, kind: output, shape index: {}]
  %s9 = sld [smem:[#allocation0]]
  $region77: #{tpu_custom_call.1} parent=0
    _
  %s11 = ssub.s32 1, %s9
  %s12 = scalar_select 0, %s11, %s9
  $region1: #{tpu_custom_call.1} parent=0
    #allocation4 [shape = 'u8[81920]{0}', space=vmem, size = 0x14000, scoped, tag = 'input window, operand 0']
    #allocation5 [shape = 's32[2]{0}', space=sflag, size = 0x8, scoped, tag = 'scoped memory for tpu_custom_call.1']
    #allocation6 [shape = 's32[2]{0}', space=sflag, size = 0x8, scoped, tag = 'scoped memory for tpu_custom_call.1']
    #allocation7 [shape = 'u8[36864]{0}', space=vmem, size = 0x9000, scoped, tag = 'input window, operand 1, single buffered']
    #allocation8 [shape = 's32[1]{0}', space=sflag, size = 0x4, scoped, tag = 'scoped memory for tpu_custom_call.1']
    #allocation9 [shape = 'u8[36864]{0}', space=vmem, size = 0x9000, scoped, tag = 'input window, operand 4, single buffered']
    #allocation10 [shape = 'u8[49152]{0}', space=vmem, size = 0xc000, scoped, tag = 'output window, operand 0']
    %13 = vsyncpa [#allocation5], 0
    %s14 = scalar_lea.sflag [#allocation5], 1
    %15 = vsyncpa %s14, 0
    %16 = vsyncpa [#allocation8], 0
    %17 = vsyncpa [#allocation6], 0
    %s18 = scalar_lea.sflag [#allocation6], 1
    %19 = vsyncpa %s18, 0
    loop: start=0, step=1, limit=4
    $region2: #{tpu_custom_call.1} parent=1 // loop_pre_header
      _
    $region3: #{tpu_custom_call.1} parent=1 // loop_header
      %s21 = sphi 0, %s25
      %p22 = scmp.ge.s32.totalorder %s21, 4
      %s31 = sphi 0, %s33
      %s34 = sphi 0, %s31
      %s35 = sphi 0, %s34
      %s51 = sphi 0, %s35
      %s55 = sphi 0, %s55
      %s57 = sphi 0, %s55
      %s58 = sphi 0, %s57
      %s72 = sphi 0, %s58
      %s76 = sphi 0, %s76
      %s78 = sphi 0, %s76
      %s79 = sphi 0, %s78
      %s93 = sphi 0, %s79
      %s97 = sphi 0, %s97
      %s99 = sphi 0, %s97
      %s100 = sphi 0, %s99
      %s114 = sphi 0, %s100
      %s118 = sphi 0, %s118
      %s120 = sphi 0, %s118
      %s121 = sphi 0, %s120
      %s135 = sphi 0, %s121
      %s139 = sphi 0, %s139
      %s141 = sphi 0, %s139
      %s142 = sphi 0, %s141
      %s156 = sphi 0, %s142
      %s160 = sphi 0, %s160
      %s162 = sphi 0, %s160
      %s163 = sphi 0, %s162
      %s177 = sphi 0, %s163
      %s181 = sphi 0, %s181
      %s183 = sphi 0, %s181
      %s184 = sphi 0, %s183
      %s198 = sphi 0, %s184
      %s204 = sphi 0, %s206
      %s207 = sphi 0, %s204
      %s208 = sphi 0, %s207
      %s224 = sphi 0, %s208
    $region4: #{tpu_custom_call.1} parent=1 // loop_header_branch
      %24 = sbr.rel (%p22) target = $region8
    $region5: #{tpu_custom_call.1} parent=1 // loop_body
      %s26 = ssub.s32 %s21, 1
      %s27 = ssub.s32 %s21, 2
      %s28 = sadd.s32 %s21, 1
      %s29 = ssub.s32 %s21, %s28
      %p30 = scmp.eq.s32.totalorder %s29, 0
      %s32 = sadd.s32 %s31, 1
      %s33 = scalar_select %p30, %s31, %s32
      %p36 = pneg %p30
      %p37 = scmp.eq.s32.totalorder %s21, 1
      %p38 = por %p36, %p37
      %p39 = scmp.ne.s32.totalorder %s31, %s34
      %p40 = scmp.eq.s32.totalorder %s21, 0
      %p41 = por %p39, %p40
      %p42 = scmp.ne.s32.totalorder %s31, %s34
      %p43 = scmp.eq.s32.totalorder %s26, 1
      %p44 = por %p42, %p43
      %p45 = scmp.ne.s32.totalorder %s34, %s35
      %p46 = scmp.eq.s32.totalorder %s26, 0
      %p47 = por %p45, %p46
      %p48 = scmp.ne.s32.totalorder %s34, %s35
      %p49 = scmp.eq.s32.totalorder %s27, 1
      %p50 = por %p48, %p49
      %p52 = scmp.ne.s32.totalorder %s35, %s51
      %p53 = scmp.eq.s32.totalorder %s27, 0
      %p54 = por %p52, %p53
      %s56 = sadd.s32 %s55, 1
      %p59 = scmp.eq.s32.totalorder %s21, 1
      %p60 = scmp.ne.s32.totalorder %s55, %s57
      %p61 = scmp.eq.s32.totalorder %s21, 0
      %p62 = por %p60, %p61
      %p63 = scmp.ne.s32.totalorder %s55, %s57
      %p64 = scmp.eq.s32.totalorder %s26, 1
      %p65 = por %p63, %p64
      %p66 = scmp.ne.s32.totalorder %s57, %s58
      %p67 = scmp.eq.s32.totalorder %s26, 0
      %p68 = por %p66, %p67
      %p69 = scmp.ne.s32.totalorder %s57, %s58
      %p70 = scmp.eq.s32.totalorder %s27, 1
      %p71 = por %p69, %p70
      %p73 = scmp.ne.s32.totalorder %s58, %s72
      %p74 = scmp.eq.s32.totalorder %s27, 0
      %p75 = por %p73, %p74
      %s77 = sadd.s32 %s76, 1
      %p80 = scmp.eq.s32.totalorder %s21, 1
      %p81 = scmp.ne.s32.totalorder %s76, %s78
      %p82 = scmp.eq.s32.totalorder %s21, 0
      %p83 = por %p81, %p82
      %p84 = scmp.ne.s32.totalorder %s76, %s78
      %p85 = scmp.eq.s32.totalorder %s26, 1
      %p86 = por %p84, %p85
      %p87 = scmp.ne.s32.totalorder %s78, %s79
      %p88 = scmp.eq.s32.totalorder %s26, 0
      %p89 = por %p87, %p88
      %p90 = scmp.ne.s32.totalorder %s78, %s79
      %p91 = scmp.eq.s32.totalorder %s27, 1
      %p92 = por %p90, %p91
      %p94 = scmp.ne.s32.totalorder %s79, %s93
      %p95 = scmp.eq.s32.totalorder %s27, 0
      %p96 = por %p94, %p95
      %s98 = sadd.s32 %s97, 1
      %p101 = scmp.eq.s32.totalorder %s21, 1
      %p102 = scmp.ne.s32.totalorder %s97, %s99
      %p103 = scmp.eq.s32.totalorder %s21, 0
      %p104 = por %p102, %p103
      %p105 = scmp.ne.s32.totalorder %s97, %s99
      %p106 = scmp.eq.s32.totalorder %s26, 1
      %p107 = por %p105, %p106
      %p108 = scmp.ne.s32.totalorder %s99, %s100
      %p109 = scmp.eq.s32.totalorder %s26, 0
      %p110 = por %p108, %p109
      %p111 = scmp.ne.s32.totalorder %s99, %s100
      %p112 = scmp.eq.s32.totalorder %s27, 1
      %p113 = por %p111, %p112
      %p115 = scmp.ne.s32.totalorder %s100, %s114
      %p116 = scmp.eq.s32.totalorder %s27, 0
      %p117 = por %p115, %p116
      %s119 = sadd.s32 %s118, 1
      %p122 = scmp.eq.s32.totalorder %s21, 1
      %p123 = scmp.ne.s32.totalorder %s118, %s120
      %p124 = scmp.eq.s32.totalorder %s21, 0
      %p125 = por %p123, %p124
      %p126 = scmp.ne.s32.totalorder %s118, %s120
      %p127 = scmp.eq.s32.totalorder %s26, 1
      %p128 = por %p126, %p127
      %p129 = scmp.ne.s32.totalorder %s120, %s121
      %p130 = scmp.eq.s32.totalorder %s26, 0
      %p131 = por %p129, %p130
      %p132 = scmp.ne.s32.totalorder %s120, %s121
      %p133 = scmp.eq.s32.totalorder %s27, 1
      %p134 = por %p132, %p133
      %p136 = scmp.ne.s32.totalorder %s121, %s135
      %p137 = scmp.eq.s32.totalorder %s27, 0
      %p138 = por %p136, %p137
      %s140 = sadd.s32 %s139, 1
      %p143 = scmp.eq.s32.totalorder %s21, 1
      %p144 = scmp.ne.s32.totalorder %s139, %s141
      %p145 = scmp.eq.s32.totalorder %s21, 0
      %p146 = por %p144, %p145
      %p147 = scmp.ne.s32.totalorder %s139, %s141
      %p148 = scmp.eq.s32.totalorder %s26, 1
      %p149 = por %p147, %p148
      %p150 = scmp.ne.s32.totalorder %s141, %s142
      %p151 = scmp.eq.s32.totalorder %s26, 0
      %p152 = por %p150, %p151
      %p153 = scmp.ne.s32.totalorder %s141, %s142
      %p154 = scmp.eq.s32.totalorder %s27, 1
      %p155 = por %p153, %p154
      %p157 = scmp.ne.s32.totalorder %s142, %s156
      %p158 = scmp.eq.s32.totalorder %s27, 0
      %p159 = por %p157, %p158
      %s161 = sadd.s32 %s160, 1
      %p164 = scmp.eq.s32.totalorder %s21, 1
      %p165 = scmp.ne.s32.totalorder %s160, %s162
      %p166 = scmp.eq.s32.totalorder %s21, 0
      %p167 = por %p165, %p166
      %p168 = scmp.ne.s32.totalorder %s160, %s162
      %p169 = scmp.eq.s32.totalorder %s26, 1
      %p170 = por %p168, %p169
      %p171 = scmp.ne.s32.totalorder %s162, %s163
      %p172 = scmp.eq.s32.totalorder %s26, 0
      %p173 = por %p171, %p172
      %p174 = scmp.ne.s32.totalorder %s162, %s163
      %p175 = scmp.eq.s32.totalorder %s27, 1
      %p176 = por %p174, %p175
      %p178 = scmp.ne.s32.totalorder %s163, %s177
      %p179 = scmp.eq.s32.totalorder %s27, 0
      %p180 = por %p178, %p179
      %s182 = sadd.s32 %s181, 1
      %p185 = scmp.eq.s32.totalorder %s21, 1
      %p186 = scmp.ne.s32.totalorder %s181, %s183
      %p187 = scmp.eq.s32.totalorder %s21, 0
      %p188 = por %p186, %p187
      %p189 = scmp.ne.s32.totalorder %s181, %s183
      %p190 = scmp.eq.s32.totalorder %s26, 1
      %p191 = por %p189, %p190
      %p192 = scmp.ne.s32.totalorder %s183, %s184
      %p193 = scmp.eq.s32.totalorder %s26, 0
      %p194 = por %p192, %p193
      %p195 = scmp.ne.s32.totalorder %s183, %s184
      %p196 = scmp.eq.s32.totalorder %s27, 1
      %p197 = por %p195, %p196
      %p199 = scmp.ne.s32.totalorder %s184, %s198
      %p200 = scmp.eq.s32.totalorder %s27, 0
      %p201 = por %p199, %p200
      %s202 = ssub.s32 %s21, %s28
      %p203 = scmp.eq.s32.totalorder %s202, 0
      %s205 = sadd.s32 %s204, 1
      %s206 = scalar_select %p203, %s204, %s205
      %p209 = pneg %p203
      %p210 = scmp.eq.s32.totalorder %s21, 1
      %p211 = por %p209, %p210
      %p212 = scmp.ne.s32.totalorder %s204, %s207
      %p213 = scmp.eq.s32.totalorder %s21, 0
      %p214 = por %p212, %p213
      %p215 = scmp.ne.s32.totalorder %s204, %s207
      %p216 = scmp.eq.s32.totalorder %s26, 1
      %p217 = por %p215, %p216
      %p218 = scmp.ne.s32.totalorder %s207, %s208
      %p219 = scmp.eq.s32.totalorder %s26, 0
      %p220 = por %p218, %p219
      %p221 = scmp.ne.s32.totalorder %s207, %s208
      %p222 = scmp.eq.s32.totalorder %s27, 1
      %p223 = por %p221, %p222
      %p225 = scmp.ne.s32.totalorder %s208, %s224
      %p226 = scmp.eq.s32.totalorder %s27, 0
      %p227 = por %p225, %p226
      %p228 = scmp.le.s32.totalorder 1, %s21
      %p229 = scmp.lt.s32.totalorder %s21, 3
      %p230 = pnand %p228, %p229
      %p231 = pneg %p230
      // Predicated region
      $region9: #{tpu_custom_call.1} parent=5 // pred_check
        _
      $region10: #{tpu_custom_call.1} parent=5 // pred_check_branch
        %233 = sbr.rel (%p230) target = $region12
      $region11: #{tpu_custom_call.1} parent=5 // pred_region
        %s234 = ssub.s32 %s21, 1
        // Predicated region
        $region13: #{tpu_custom_call.1} parent=11 // pred_check
          %p235 = pneg %p68
        $region14: #{tpu_custom_call.1} parent=11 // pred_check_branch
          %237 = sbr.rel (%p235) target = $region16
        $region15: #{tpu_custom_call.1} parent=11 // pred_region
          %239 = vsyncadd [#allocation8], 0
          %s240 = sshll.u32 %s1, 4
          %s241 = int_to_ptr.hbm [resolvable:$true] %s240
          %s242 = sshll.u32 [#allocation7], 4
          %s243 = int_to_ptr.vmem [resolvable:$true] %s242
          %248 = dma.hbm_to_vmem [thread:$0]  %s241, 1152, %s243, [#allocation8], 64, 64, 4
        $region16: #{tpu_custom_call.1} parent=11 // pred_fallthru
          _
        // Predicated region
        $region17: #{tpu_custom_call.1} parent=11 // pred_check
          %p249 = pneg %p89
        $region18: #{tpu_custom_call.1} parent=11 // pred_check_branch
          %251 = sbr.rel (%p249) target = $region20
        $region19: #{tpu_custom_call.1} parent=11 // pred_region
          _
        $region20: #{tpu_custom_call.1} parent=11 // pred_fallthru
          _
        // Predicated region
        $region21: #{tpu_custom_call.1} parent=11 // pred_check
          %p252 = pneg %p110
        $region22: #{tpu_custom_call.1} parent=11 // pred_check_branch
          %254 = sbr.rel (%p252) target = $region24
        $region23: #{tpu_custom_call.1} parent=11 // pred_region
          _
        $region24: #{tpu_custom_call.1} parent=11 // pred_fallthru
          _
        // Predicated region
        $region25: #{tpu_custom_call.1} parent=11 // pred_check
          %p255 = pneg %p131
        $region26: #{tpu_custom_call.1} parent=11 // pred_check_branch
          %257 = sbr.rel (%p255) target = $region28
        $region27: #{tpu_custom_call.1} parent=11 // pred_region
          %259 = vsyncadd [#allocation8], 0
          %s260 = sshll.u32 %s4, 4
          %s261 = int_to_ptr.hbm [resolvable:$true] %s260
          %s262 = sshll.u32 [#allocation9], 4
          %s263 = int_to_ptr.vmem [resolvable:$true] %s262
          %268 = dma.hbm_to_vmem [thread:$0]  %s261, 1152, %s263, [#allocation8], 64, 64, 4
        $region28: #{tpu_custom_call.1} parent=11 // pred_fallthru
          _
        // Predicated region
        $region29: #{tpu_custom_call.1} parent=11 // pred_check
          %p269 = pneg %p152
        $region30: #{tpu_custom_call.1} parent=11 // pred_check_branch
          %271 = sbr.rel (%p269) target = $region32
        $region31: #{tpu_custom_call.1} parent=11 // pred_region
          _
        $region32: #{tpu_custom_call.1} parent=11 // pred_fallthru
          _
        // Predicated region
        $region33: #{tpu_custom_call.1} parent=11 // pred_check
          %p272 = pneg %p173
        $region34: #{tpu_custom_call.1} parent=11 // pred_check_branch
          %274 = sbr.rel (%p272) target = $region36
        $region35: #{tpu_custom_call.1} parent=11 // pred_region
          _
        $region36: #{tpu_custom_call.1} parent=11 // pred_fallthru
          _
        // Predicated region
        $region37: #{tpu_custom_call.1} parent=11 // pred_check
          %p275 = pneg %p194
        $region38: #{tpu_custom_call.1} parent=11 // pred_check_branch
          %277 = sbr.rel (%p275) target = $region40
        $region39: #{tpu_custom_call.1} parent=11 // pred_region
          _
        $region40: #{tpu_custom_call.1} parent=11 // pred_fallthru
          _
      $region12: #{tpu_custom_call.1} parent=5 // pred_fallthru
        _
      %p278 = scmp.lt.s32.totalorder %s21, 2
      // Predicated region
      $region41: #{tpu_custom_call.1} parent=5 // pred_check
        %p279 = pneg %p278
      $region42: #{tpu_custom_call.1} parent=5 // pred_check_branch
        %281 = sbr.rel (%p279) target = $region44
      $region43: #{tpu_custom_call.1} parent=5 // pred_region
        // Predicated region
        $region45: #{tpu_custom_call.1} parent=43 // pred_check
          %p282 = pneg %p41
        $region46: #{tpu_custom_call.1} parent=43 // pred_check_branch
          %284 = sbr.rel (%p282) target = $region48
        $region47: #{tpu_custom_call.1} parent=43 // pred_region
          %s285 = sand.u32 %s31, 1
          %s286 = scalar_lea.sflag [#allocation5], %s285
          %s287 = sand.u32 %s31, 1
          %s288 = smul.addr %s287, 80
          %s289 = scalar_lea.vmem [#allocation4], %s288
          %291 = vsyncadd %s286, 0
          %s292 = smul.addr %s21, 10
          %s293 = smul.addr %s292, 8
          %s294 = scalar_lea.hbm %s0, %s293
          %s295 = sshll.u32 %s294, 4
          %s296 = int_to_ptr.hbm [resolvable:$true] %s295
          %s297 = sshll.u32 %s289, 4
          %s298 = int_to_ptr.vmem [resolvable:$true] %s297
          %303 = dma.hbm_to_vmem [thread:$0]  %s296, 1280, %s298, %s286, 640, 640, 40
        $region48: #{tpu_custom_call.1} parent=43 // pred_fallthru
          _
      $region44: #{tpu_custom_call.1} parent=5 // pred_fallthru
        _
      %p304 = scmp.le.s32.totalorder 1, %s21
      %p305 = scmp.lt.s32.totalorder %s21, 3
      %p306 = pnand %p304, %p305
      %p307 = pneg %p306
      // Predicated region
      $region49: #{tpu_custom_call.1} parent=5 // pred_check
        _
      $region50: #{tpu_custom_call.1} parent=5 // pred_check_branch
        %309 = sbr.rel (%p306) target = $region52
      $region51: #{tpu_custom_call.1} parent=5 // pred_region
        %s310 = ssub.s32 %s21, 1
        %s311 = sand.u32 %s34, 1
        %s312 = scalar_lea.sflag [#allocation5], %s311
        %s313 = sand.u32 %s34, 1
        %s314 = smul.addr %s313, 80
        %s315 = scalar_lea.vmem [#allocation4], %s314
        // Predicated region
        $region53: #{tpu_custom_call.1} parent=51 // pred_check
          %p316 = pneg %p47
        $region54: #{tpu_custom_call.1} parent=51 // pred_check_branch
          %318 = sbr.rel (%p316) target = $region56
        $region55: #{tpu_custom_call.1} parent=51 // pred_region
          %320 = dma.done %s312, 1280
        $region56: #{tpu_custom_call.1} parent=51 // pred_fallthru
          _
        // Predicated region
        $region57: #{tpu_custom_call.1} parent=51 // pred_check
          %p321 = pneg %p68
        $region58: #{tpu_custom_call.1} parent=51 // pred_check_branch
          %323 = sbr.rel (%p321) target = $region60
        $region59: #{tpu_custom_call.1} parent=51 // pred_region
          %325 = dma.done [#allocation8], 1152
        $region60: #{tpu_custom_call.1} parent=51 // pred_fallthru
          _
        // Predicated region
        $region61: #{tpu_custom_call.1} parent=51 // pred_check
          %p326 = pneg %p131
        $region62: #{tpu_custom_call.1} parent=51 // pred_check_branch
          %328 = sbr.rel (%p326) target = $region64
        $region63: #{tpu_custom_call.1} parent=51 // pred_region
          %330 = dma.done [#allocation8], 1152
        $region64: #{tpu_custom_call.1} parent=51 // pred_fallthru
          _
        %s331 = sand.u32 %s34, 1
        %s332 = scalar_lea.sflag [#allocation5], %s331
        %s333 = sand.u32 %s34, 1
        %s334 = smul.addr %s333, 80
        %s335 = scalar_lea.vmem [#allocation4], %s334
        %p336 = pneg %p47
        %p337 = pneg %p44
        %p338 = pneg %p68
        %p339 = pneg %p65
        %p340 = pneg %p89
        %p341 = pneg %p86
        %p342 = pneg %p110
        %p343 = pneg %p107
        %p344 = pneg %p131
        %p345 = pneg %p128
        %p346 = pneg %p152
        %p347 = pneg %p149
        %p348 = pneg %p173
        %p349 = pneg %p170
        %p350 = pneg %p194
        %p351 = pneg %p191
        %p352 = pneg %p220
        %p353 = pneg %p217
        %s354 = sand.u32 %s207, 1
        %s355 = scalar_lea.sflag [#allocation6], %s354
        %s356 = sand.u32 %s207, 1
        %s357 = smul.addr %s356, 48
        %s358 = scalar_lea.vmem [#allocation10], %s357
        %v360 = vld [vmem:[%s2] sm:$0xff]
        %v361 = vld [vmem:[%s2 + $0x8] sm:$0xff]
        %363 = vset.pattern.permute.xlu0 0
        %364 = vperm.xlu0 %363, %v360
        %v365 = vpop.permute.xlu0 %364
        %368 = vset.pattern.permute.xlu0 0
        %369 = vperm.xlu0 %368, %v361
        %v370 = vpop.permute.xlu0 %369
        %v372 = vld [vmem:[%s3] sm:$0xff]
        %v373 = vld [vmem:[%s3 + $0x8] sm:$0xff]
        %375 = vset.pattern.permute.xlu0 0
        %376 = vperm.xlu0 %375, %v372
        %v377 = vpop.permute.xlu0 %376
        %380 = vset.pattern.permute.xlu0 0
        %381 = vperm.xlu0 %380, %v373
        %v382 = vpop.permute.xlu0 %381
        %v384 = vld [vmem:[%s7] sm:$0xf]
        %v386 = vperm.slane %v384, 0
        %v387 = vperm.slane %v384, 1
        %v388 = vperm.slane %v384, 2
        %v389 = vperm.slane %v384, 3
        %v394 = vld [vmem:[%s5] sm:$0xff]
        %v395 = vld [vmem:[%s5 + $0x8] sm:$0xff]
        %397 = vset.pattern.permute.xlu0 0
        %398 = vperm.xlu0 %397, %v394
        %v399 = vpop.permute.xlu0 %398
        %402 = vset.pattern.permute.xlu0 0
        %403 = vperm.xlu0 %402, %v395
        %v404 = vpop.permute.xlu0 %403
        %v406 = vld [vmem:[%s6] sm:$0xff]
        %v407 = vld [vmem:[%s6 + $0x8] sm:$0xff]
        %409 = vset.pattern.permute.xlu0 0
        %410 = vperm.xlu0 %409, %v406
        %v411 = vpop.permute.xlu0 %410
        %414 = vset.pattern.permute.xlu0 0
        %415 = vperm.xlu0 %414, %v407
        %v416 = vpop.permute.xlu0 %415
        %v418 = vld [vmem:[%s315] sm:$0xff]
        %v419 = vld [vmem:[%s315 + $0x8] sm:$0xff]
        %v420 = vld [vmem:[%s315 + $0x10] sm:$0xff]
        %v421 = vld [vmem:[%s315 + $0x18] sm:$0xff]
        %v422 = vld [vmem:[%s315 + $0x20] sm:$0xff]
        %v423 = vld [vmem:[%s315 + $0x28] sm:$0xff]
        %v424 = vld [vmem:[%s315 + $0x30] sm:$0xff]
        %v425 = vld [vmem:[%s315 + $0x38] sm:$0xff]
        %v426 = vld [vmem:[%s315 + $0x40] sm:$0xff]
        %v427 = vld [vmem:[%s315 + $0x48] sm:$0xff]
        %v428 = vpack.c.bf16 %v419, %v418
        %v429 = vpack.c.bf16 %v421, %v420
        %v430 = vpack.c.bf16 %v422, %v422
        %v431 = vpack.c.bf16 %v424, %v423
        %v432 = vpack.c.bf16 %v426, %v425
        %v433 = vpack.c.bf16 %v427, %v427
        %434 = vst [vmem:[#allocation2] sm:$0xff] %v428
        %435 = vst [vmem:[#allocation2 + $0x8] sm:$0xff] %v429
        %436 = vst [vmem:[#allocation2 + $0x10] sm:$0xf] %v430
        %437 = vst [vmem:[#allocation2 + $0x14] sm:$0xff] %v431
        %438 = vst [vmem:[#allocation2 + $0x1c] sm:$0xff] %v432
        %439 = vst [vmem:[#allocation2 + $0x24] sm:$0xf] %v433
        %v440 = vld [vmem:[#allocation7] sm:$0xf]
        %v441 = vld [vmem:[#allocation7 + $0x4] sm:$0xf]
        %v442 = vld [vmem:[#allocation2] sm:$0xff]
        %v443 = vld [vmem:[#allocation2 + $0x8] sm:$0xff]
        %v444 = vld [vmem:[#allocation2 + $0x14] sm:$0xff]
        %v445 = vld [vmem:[#allocation2 + $0x1c] sm:$0xff]
        %s446 = scalar_lea.vmem [#allocation7], 8
        %v447 = vld [vmem:[%s446] sm:$0xf]
        %v448 = vld [vmem:[%s446 + $0x4] sm:$0xf]
        %v449 = vld [vmem:[#allocation2] sm:$0xff]
        %v450 = vld [vmem:[#allocation2 + $0x8] sm:$0xff]
        %v451 = vld [vmem:[#allocation2 + $0x10] sm:$0xf]
        %v452 = vld [vmem:[#allocation2 + $0x14] sm:$0xff]
        %v453 = vld [vmem:[#allocation2 + $0x1c] sm:$0xff]
        %v454 = vld [vmem:[#allocation2 + $0x24] sm:$0xf]
        %v457 = vunpack.c.l.b16 %v447
        %v458 = vunpack.c.l.b16 %v448
        %v459 = vpack.c.b16 %v458, %v457
        %v466 = vunpack.c.l.b16 %v449
        %v467 = vunpack.c.h.b16 %v449
        %v468 = vunpack.c.l.b16 %v450
        %v469 = vunpack.c.h.b16 %v450
        %v470 = vunpack.c.l.b16 %v451
        %v471 = vunpack.c.l.b16 %v452
        %v472 = vunpack.c.h.b16 %v452
        %v473 = vunpack.c.l.b16 %v453
        %v474 = vunpack.c.h.b16 %v453
        %v475 = vunpack.c.l.b16 %v454
        %v476 = vpack.c.b16 %v471, %v466
        %v477 = vpack.c.b16 %v472, %v467
        %v478 = vpack.c.b16 %v473, %v468
        %v479 = vpack.c.b16 %v474, %v469
        %v480 = vpack.c.b16 %v475, %v470
        %481 = vrot.lane.b32.xlu0 %v476, 127
        %v482 = vpop.permute.xlu0 %481
        %483 = vrot.lane.b32.xlu0 %v477, 127
        %v484 = vpop.permute.xlu0 %483
        %485 = vrot.lane.b32.xlu0 %v478, 127
        %v486 = vpop.permute.xlu0 %485
        %487 = vrot.lane.b32.xlu0 %v479, 127
        %v488 = vpop.permute.xlu0 %487
        %489 = vrot.lane.b32.xlu0 %v480, 127
        %v490 = vpop.permute.xlu0 %489
        %vm491 = vcmask 1039360
        %v492 = vsel %vm491, %v482, %v484
        %v493 = vsel %vm491, %v484, %v486
        %v494 = vsel %vm491, %v486, %v488
        %v495 = vsel %vm491, %v488, %v490
        %vm500 = vcmask 130048
        %v502 = vsel %vm500, %v459, 0
        %504 = vmatpush.bf16.msra.mxu0 0
        %505 = vmatpush.bf16.msra.mxu0 0
        %506 = vmatpush.bf16.msra.mxu0 0
        %507 = vmatpush.bf16.msra.mxu0 0
        %508 = vmatpush.bf16.msra.mxu0 0
        %509 = vmatpush.bf16.msra.mxu0 0
        %510 = vmatpush.bf16.msra.mxu0 0
        %511 = vmatpush.bf16.msra.mxu0 %v492
        %512 = vmatmul.bf16.gmra.mxu0 %v502
        %v513 = vpop.f32.mrf.mxu0
        %v514 = vadd.f32 0.0, %v513
        %v515 = vpop.f32.mrf.mxu0
        %v516 = vadd.f32 0.0, %v515
        %517 = vdwg.mxu0
        %518 = vmatpush.bf16.msra.mxu0 0
        %519 = vmatpush.bf16.msra.mxu0 0
        %520 = vmatpush.bf16.msra.mxu0 0
        %521 = vmatpush.bf16.msra.mxu0 0
        %522 = vmatpush.bf16.msra.mxu0 0
        %523 = vmatpush.bf16.msra.mxu0 0
        %524 = vmatpush.bf16.msra.mxu0 0
        %525 = vmatpush.bf16.msra.mxu0 %v493
        %526 = vmatmul.bf16.gmra.mxu0 %v502
        %v527 = vpop.f32.mrf.mxu0
        %v528 = vadd.f32 0.0, %v527
        %v529 = vpop.f32.mrf.mxu0
        %v530 = vadd.f32 0.0, %v529
        %531 = vdwg.mxu0
        %532 = vmatpush.bf16.msra.mxu0 0
        %533 = vmatpush.bf16.msra.mxu0 0
        %534 = vmatpush.bf16.msra.mxu0 0
        %535 = vmatpush.bf16.msra.mxu0 0
        %536 = vmatpush.bf16.msra.mxu0 0
        %537 = vmatpush.bf16.msra.mxu0 0
        %538 = vmatpush.bf16.msra.mxu0 0
        %539 = vmatpush.bf16.msra.mxu0 %v494
        %540 = vmatmul.bf16.gmra.mxu0 %v502
        %v541 = vpop.f32.mrf.mxu0
        %v542 = vadd.f32 0.0, %v541
        %v543 = vpop.f32.mrf.mxu0
        %v544 = vadd.f32 0.0, %v543
        %545 = vdwg.mxu0
        %546 = vmatpush.bf16.msra.mxu0 0
        %547 = vmatpush.bf16.msra.mxu0 0
        %548 = vmatpush.bf16.msra.mxu0 0
        %549 = vmatpush.bf16.msra.mxu0 0
        %550 = vmatpush.bf16.msra.mxu0 0
        %551 = vmatpush.bf16.msra.mxu0 0
        %552 = vmatpush.bf16.msra.mxu0 0
        %553 = vmatpush.bf16.msra.mxu0 %v495
        %554 = vmatmul.bf16.gmra.mxu0 %v502
        %v555 = vpop.f32.mrf.mxu0
        %v556 = vadd.f32 0.0, %v555
        %v557 = vpop.f32.mrf.mxu0
        %v558 = vadd.f32 0.0, %v557
        %559 = vdwg.mxu0
        %v562 = vunpack.c.l.b16 %v440
        %v563 = vunpack.c.l.b16 %v441
        %v564 = vpack.c.b16 %v563, %v562
        %v569 = vunpack.c.l.b16 %v442
        %v570 = vunpack.c.h.b16 %v442
        %v571 = vunpack.c.l.b16 %v443
        %v572 = vunpack.c.h.b16 %v443
        %v573 = vunpack.c.l.b16 %v444
        %v574 = vunpack.c.h.b16 %v444
        %v575 = vunpack.c.l.b16 %v445
        %v576 = vunpack.c.h.b16 %v445
        %v577 = vpack.c.b16 %v573, %v569
        %v578 = vpack.c.b16 %v574, %v570
        %v579 = vpack.c.b16 %v575, %v571
        %v580 = vpack.c.b16 %v576, %v572
        %v586 = vsel %vm500, %v564, 0
        %588 = vmatpush.bf16.msra.mxu0 0
        %589 = vmatpush.bf16.msra.mxu0 0
        %590 = vmatpush.bf16.msra.mxu0 0
        %591 = vmatpush.bf16.msra.mxu0 0
        %592 = vmatpush.bf16.msra.mxu0 0
        %593 = vmatpush.bf16.msra.mxu0 0
        %594 = vmatpush.bf16.msra.mxu0 0
        %595 = vmatpush.bf16.msra.mxu0 %v577
        %596 = vmatmul.bf16.gmra.mxu0 %v586
        %v597 = vpop.f32.mrf.mxu0
        %v598 = vadd.f32 %v514, %v597
        %v599 = vpop.f32.mrf.mxu0
        %v600 = vadd.f32 %v516, %v599
        %601 = vdwg.mxu0
        %602 = vmatpush.bf16.msra.mxu0 0
        %603 = vmatpush.bf16.msra.mxu0 0
        %604 = vmatpush.bf16.msra.mxu0 0
        %605 = vmatpush.bf16.msra.mxu0 0
        %606 = vmatpush.bf16.msra.mxu0 0
        %607 = vmatpush.bf16.msra.mxu0 0
        %608 = vmatpush.bf16.msra.mxu0 0
        %609 = vmatpush.bf16.msra.mxu0 %v578
        %610 = vmatmul.bf16.gmra.mxu0 %v586
        %v611 = vpop.f32.mrf.mxu0
        %v612 = vadd.f32 %v528, %v611
        %v613 = vpop.f32.mrf.mxu0
        %v614 = vadd.f32 %v530, %v613
        %615 = vdwg.mxu0
        %616 = vmatpush.bf16.msra.mxu0 0
        %617 = vmatpush.bf16.msra.mxu0 0
        %618 = vmatpush.bf16.msra.mxu0 0
        %619 = vmatpush.bf16.msra.mxu0 0
        %620 = vmatpush.bf16.msra.mxu0 0
        %621 = vmatpush.bf16.msra.mxu0 0
        %622 = vmatpush.bf16.msra.mxu0 0
        %623 = vmatpush.bf16.msra.mxu0 %v579
        %624 = vmatmul.bf16.gmra.mxu0 %v586
        %v625 = vpop.f32.mrf.mxu0
        %v626 = vadd.f32 %v542, %v625
        %v627 = vpop.f32.mrf.mxu0
        %v628 = vadd.f32 %v544, %v627
        %629 = vdwg.mxu0
        %630 = vmatpush.bf16.msra.mxu0 0
        %631 = vmatpush.bf16.msra.mxu0 0
        %632 = vmatpush.bf16.msra.mxu0 0
        %633 = vmatpush.bf16.msra.mxu0 0
        %634 = vmatpush.bf16.msra.mxu0 0
        %635 = vmatpush.bf16.msra.mxu0 0
        %636 = vmatpush.bf16.msra.mxu0 0
        %637 = vmatpush.bf16.msra.mxu0 %v580
        %638 = vmatmul.bf16.gmra.mxu0 %v586
        %v639 = vpop.f32.mrf.mxu0
        %v640 = vadd.f32 %v556, %v639
        %v641 = vpop.f32.mrf.mxu0
        %v642 = vadd.f32 %v558, %v641
        %643 = vdwg.mxu0
        %s644 = scalar_lea.vmem [#allocation7], 16
        %v645 = vld [vmem:[%s644] sm:$0xf]
        %v646 = vld [vmem:[%s644 + $0x4] sm:$0xf]
        %v649 = vunpack.c.l.b16 %v645
        %v650 = vunpack.c.l.b16 %v646
        %v651 = vpack.c.b16 %v650, %v649
        %652 = vrot.lane.b32.xlu0 %v476, 126
        %v653 = vpop.permute.xlu0 %652
        %654 = vrot.lane.b32.xlu0 %v477, 126
        %v655 = vpop.permute.xlu0 %654
        %656 = vrot.lane.b32.xlu0 %v478, 126
        %v657 = vpop.permute.xlu0 %656
        %658 = vrot.lane.b32.xlu0 %v479, 126
        %v659 = vpop.permute.xlu0 %658
        %660 = vrot.lane.b32.xlu0 %v480, 126
        %v661 = vpop.permute.xlu0 %660
        %vm662 = vcmask 1031168
        %v663 = vsel %vm662, %v653, %v655
        %v664 = vsel %vm662, %v655, %v657
        %v665 = vsel %vm662, %v657, %v659
        %v666 = vsel %vm662, %v659, %v661
        %v672 = vsel %vm500, %v651, 0
        %674 = vmatpush.bf16.msra.mxu0 0
        %675 = vmatpush.bf16.msra.mxu0 0
        %676 = vmatpush.bf16.msra.mxu0 0
        %677 = vmatpush.bf16.msra.mxu0 0
        %678 = vmatpush.bf16.msra.mxu0 0
        %679 = vmatpush.bf16.msra.mxu0 0
        %680 = vmatpush.bf16.msra.mxu0 0
        %681 = vmatpush.bf16.msra.mxu0 %v663
        %682 = vmatmul.bf16.gmra.mxu0 %v672
        %v683 = vpop.f32.mrf.mxu0
        %v684 = vadd.f32 0.0, %v683
        %v685 = vpop.f32.mrf.mxu0
        %v686 = vadd.f32 0.0, %v685
        %687 = vdwg.mxu0
        %688 = vmatpush.bf16.msra.mxu0 0
        %689 = vmatpush.bf16.msra.mxu0 0
        %690 = vmatpush.bf16.msra.mxu0 0
        %691 = vmatpush.bf16.msra.mxu0 0
        %692 = vmatpush.bf16.msra.mxu0 0
        %693 = vmatpush.bf16.msra.mxu0 0
        %694 = vmatpush.bf16.msra.mxu0 0
        %695 = vmatpush.bf16.msra.mxu0 %v664
        %696 = vmatmul.bf16.gmra.mxu0 %v672
        %v697 = vpop.f32.mrf.mxu0
        %v698 = vadd.f32 0.0, %v697
        %v699 = vpop.f32.mrf.mxu0
        %v700 = vadd.f32 0.0, %v699
        %701 = vdwg.mxu0
        %702 = vmatpush.bf16.msra.mxu0 0
        %703 = vmatpush.bf16.msra.mxu0 0
        %704 = vmatpush.bf16.msra.mxu0 0
        %705 = vmatpush.bf16.msra.mxu0 0
        %706 = vmatpush.bf16.msra.mxu0 0
        %707 = vmatpush.bf16.msra.mxu0 0
        %708 = vmatpush.bf16.msra.mxu0 0
        %709 = vmatpush.bf16.msra.mxu0 %v665
        %710 = vmatmul.bf16.gmra.mxu0 %v672
        %v711 = vpop.f32.mrf.mxu0
        %v712 = vadd.f32 0.0, %v711
        %v713 = vpop.f32.mrf.mxu0
        %v714 = vadd.f32 0.0, %v713
        %715 = vdwg.mxu0
        %716 = vmatpush.bf16.msra.mxu0 0
        %717 = vmatpush.bf16.msra.mxu0 0
        %718 = vmatpush.bf16.msra.mxu0 0
        %719 = vmatpush.bf16.msra.mxu0 0
        %720 = vmatpush.bf16.msra.mxu0 0
        %721 = vmatpush.bf16.msra.mxu0 0
        %722 = vmatpush.bf16.msra.mxu0 0
        %723 = vmatpush.bf16.msra.mxu0 %v666
        %724 = vmatmul.bf16.gmra.mxu0 %v672
        %v725 = vpop.f32.mrf.mxu0
        %v726 = vadd.f32 0.0, %v725
        %v727 = vpop.f32.mrf.mxu0
        %v728 = vadd.f32 0.0, %v727
        %729 = vdwg.mxu0
        %v730 = vadd.f32 %v598, %v684
        %v731 = vadd.f32 %v612, %v698
        %v732 = vadd.f32 %v626, %v712
        %v733 = vadd.f32 %v640, %v726
        %v734 = vadd.f32 %v600, %v686
        %v735 = vadd.f32 %v614, %v700
        %v736 = vadd.f32 %v628, %v714
        %v737 = vadd.f32 %v642, %v728
        %s738 = scalar_lea.vmem [#allocation7], 24
        %v739 = vld [vmem:[%s738] sm:$0xf]
        %v740 = vld [vmem:[%s738 + $0x4] sm:$0xf]
        %v743 = vunpack.c.l.b16 %v739
        %v744 = vunpack.c.l.b16 %v740
        %v745 = vpack.c.b16 %v744, %v743
        %746 = vrot.lane.b32.xlu0 %v476, 110
        %v747 = vpop.permute.xlu0 %746
        %748 = vrot.lane.b32.xlu0 %v477, 110
        %v749 = vpop.permute.xlu0 %748
        %750 = vrot.lane.b32.xlu0 %v478, 110
        %v751 = vpop.permute.xlu0 %750
        %752 = vrot.lane.b32.xlu0 %v479, 110
        %v753 = vpop.permute.xlu0 %752
        %754 = vrot.lane.b32.xlu0 %v480, 110
        %v755 = vpop.permute.xlu0 %754
        %vm756 = vcmask 900096
        %v757 = vsel %vm756, %v747, %v749
        %v758 = vsel %vm756, %v749, %v751
        %v759 = vsel %vm756, %v751, %v753
        %v760 = vsel %vm756, %v753, %v755
        %v766 = vsel %vm500, %v745, 0
        %768 = vmatpush.bf16.msra.mxu0 0
        %769 = vmatpush.bf16.msra.mxu0 0
        %770 = vmatpush.bf16.msra.mxu0 0
        %771 = vmatpush.bf16.msra.mxu0 0
        %772 = vmatpush.bf16.msra.mxu0 0
        %773 = vmatpush.bf16.msra.mxu0 0
        %774 = vmatpush.bf16.msra.mxu0 0
        %775 = vmatpush.bf16.msra.mxu0 %v757
        %776 = vmatmul.bf16.gmra.mxu0 %v766
        %v777 = vpop.f32.mrf.mxu0
        %v778 = vadd.f32 0.0, %v777
        %v779 = vpop.f32.mrf.mxu0
        %v780 = vadd.f32 0.0, %v779
        %781 = vdwg.mxu0
        %782 = vmatpush.bf16.msra.mxu0 0
        %783 = vmatpush.bf16.msra.mxu0 0
        %784 = vmatpush.bf16.msra.mxu0 0
        %785 = vmatpush.bf16.msra.mxu0 0
        %786 = vmatpush.bf16.msra.mxu0 0
        %787 = vmatpush.bf16.msra.mxu0 0
        %788 = vmatpush.bf16.msra.mxu0 0
        %789 = vmatpush.bf16.msra.mxu0 %v758
        %790 = vmatmul.bf16.gmra.mxu0 %v766
        %v791 = vpop.f32.mrf.mxu0
        %v792 = vadd.f32 0.0, %v791
        %v793 = vpop.f32.mrf.mxu0
        %v794 = vadd.f32 0.0, %v793
        %795 = vdwg.mxu0
        %796 = vmatpush.bf16.msra.mxu0 0
        %797 = vmatpush.bf16.msra.mxu0 0
        %798 = vmatpush.bf16.msra.mxu0 0
        %799 = vmatpush.bf16.msra.mxu0 0
        %800 = vmatpush.bf16.msra.mxu0 0
        %801 = vmatpush.bf16.msra.mxu0 0
        %802 = vmatpush.bf16.msra.mxu0 0
        %803 = vmatpush.bf16.msra.mxu0 %v759
        %804 = vmatmul.bf16.gmra.mxu0 %v766
        %v805 = vpop.f32.mrf.mxu0
        %v806 = vadd.f32 0.0, %v805
        %v807 = vpop.f32.mrf.mxu0
        %v808 = vadd.f32 0.0, %v807
        %809 = vdwg.mxu0
        %810 = vmatpush.bf16.msra.mxu0 0
        %811 = vmatpush.bf16.msra.mxu0 0
        %812 = vmatpush.bf16.msra.mxu0 0
        %813 = vmatpush.bf16.msra.mxu0 0
        %814 = vmatpush.bf16.msra.mxu0 0
        %815 = vmatpush.bf16.msra.mxu0 0
        %816 = vmatpush.bf16.msra.mxu0 0
        %817 = vmatpush.bf16.msra.mxu0 %v760
        %818 = vmatmul.bf16.gmra.mxu0 %v766
        %v819 = vpop.f32.mrf.mxu0
        %v820 = vadd.f32 0.0, %v819
        %v821 = vpop.f32.mrf.mxu0
        %v822 = vadd.f32 0.0, %v821
        %823 = vdwg.mxu0
        %v824 = vadd.f32 %v730, %v778
        %v825 = vadd.f32 %v731, %v792
        %v826 = vadd.f32 %v732, %v806
        %v827 = vadd.f32 %v733, %v820
        %v828 = vadd.f32 %v734, %v780
        %v829 = vadd.f32 %v735, %v794
        %v830 = vadd.f32 %v736, %v808
        %v831 = vadd.f32 %v737, %v822
        %s832 = scalar_lea.vmem [#allocation7], 32
        %v833 = vld [vmem:[%s832] sm:$0xf]
        %v834 = vld [vmem:[%s832 + $0x4] sm:$0xf]
        %v837 = vunpack.c.l.b16 %v833
        %v838 = vunpack.c.l.b16 %v834
        %v839 = vpack.c.b16 %v838, %v837
        %840 = vrot.lane.b32.xlu0 %v476, 109
        %v841 = vpop.permute.xlu0 %840
        %842 = vrot.lane.b32.xlu0 %v477, 109
        %v843 = vpop.permute.xlu0 %842
        %844 = vrot.lane.b32.xlu0 %v478, 109
        %v845 = vpop.permute.xlu0 %844
        %846 = vrot.lane.b32.xlu0 %v479, 109
        %v847 = vpop.permute.xlu0 %846
        %848 = vrot.lane.b32.xlu0 %v480, 109
        %v849 = vpop.permute.xlu0 %848
        %vm850 = vcmask 891904
        %v851 = vsel %vm850, %v841, %v843
        %v852 = vsel %vm850, %v843, %v845
        %v853 = vsel %vm850, %v845, %v847
        %v854 = vsel %vm850, %v847, %v849
        %v860 = vsel %vm500, %v839, 0
        %862 = vmatpush.bf16.msra.mxu0 0
        %863 = vmatpush.bf16.msra.mxu0 0
        %864 = vmatpush.bf16.msra.mxu0 0
        %865 = vmatpush.bf16.msra.mxu0 0
        %866 = vmatpush.bf16.msra.mxu0 0
        %867 = vmatpush.bf16.msra.mxu0 0
        %868 = vmatpush.bf16.msra.mxu0 0
        %869 = vmatpush.bf16.msra.mxu0 %v851
        %870 = vmatmul.bf16.gmra.mxu0 %v860
        %v871 = vpop.f32.mrf.mxu0
        %v872 = vadd.f32 0.0, %v871
        %v873 = vpop.f32.mrf.mxu0
        %v874 = vadd.f32 0.0, %v873
        %875 = vdwg.mxu0
        %876 = vmatpush.bf16.msra.mxu0 0
        %877 = vmatpush.bf16.msra.mxu0 0
        %878 = vmatpush.bf16.msra.mxu0 0
        %879 = vmatpush.bf16.msra.mxu0 0
        %880 = vmatpush.bf16.msra.mxu0 0
        %881 = vmatpush.bf16.msra.mxu0 0
        %882 = vmatpush.bf16.msra.mxu0 0
        %883 = vmatpush.bf16.msra.mxu0 %v852
        %884 = vmatmul.bf16.gmra.mxu0 %v860
        %v885 = vpop.f32.mrf.mxu0
        %v886 = vadd.f32 0.0, %v885
        %v887 = vpop.f32.mrf.mxu0
        %v888 = vadd.f32 0.0, %v887
        %889 = vdwg.mxu0
        %890 = vmatpush.bf16.msra.mxu0 0
        %891 = vmatpush.bf16.msra.mxu0 0
        %892 = vmatpush.bf16.msra.mxu0 0
        %893 = vmatpush.bf16.msra.mxu0 0
        %894 = vmatpush.bf16.msra.mxu0 0
        %895 = vmatpush.bf16.msra.mxu0 0
        %896 = vmatpush.bf16.msra.mxu0 0
        %897 = vmatpush.bf16.msra.mxu0 %v853
        %898 = vmatmul.bf16.gmra.mxu0 %v860
        %v899 = vpop.f32.mrf.mxu0
        %v900 = vadd.f32 0.0, %v899
        %v901 = vpop.f32.mrf.mxu0
        %v902 = vadd.f32 0.0, %v901
        %903 = vdwg.mxu0
        %904 = vmatpush.bf16.msra.mxu0 0
        %905 = vmatpush.bf16.msra.mxu0 0
        %906 = vmatpush.bf16.msra.mxu0 0
        %907 = vmatpush.bf16.msra.mxu0 0
        %908 = vmatpush.bf16.msra.mxu0 0
        %909 = vmatpush.bf16.msra.mxu0 0
        %910 = vmatpush.bf16.msra.mxu0 0
        %911 = vmatpush.bf16.msra.mxu0 %v854
        %912 = vmatmul.bf16.gmra.mxu0 %v860
        %v913 = vpop.f32.mrf.mxu0
        %v914 = vadd.f32 0.0, %v913
        %v915 = vpop.f32.mrf.mxu0
        %v916 = vadd.f32 0.0, %v915
        %917 = vdwg.mxu0
        %v918 = vadd.f32 %v824, %v872
        %v919 = vadd.f32 %v825, %v886
        %v920 = vadd.f32 %v826, %v900
        %v921 = vadd.f32 %v827, %v914
        %v922 = vadd.f32 %v828, %v874
        %v923 = vadd.f32 %v829, %v888
        %v924 = vadd.f32 %v830, %v902
        %v925 = vadd.f32 %v831, %v916
        %s926 = scalar_lea.vmem [#allocation7], 40
        %v927 = vld [vmem:[%s926] sm:$0xf]
        %v928 = vld [vmem:[%s926 + $0x4] sm:$0xf]
        %v931 = vunpack.c.l.b16 %v927
        %v932 = vunpack.c.l.b16 %v928
        %v933 = vpack.c.b16 %v932, %v931
        %934 = vrot.lane.b32.xlu0 %v476, 108
        %v935 = vpop.permute.xlu0 %934
        %936 = vrot.lane.b32.xlu0 %v477, 108
        %v937 = vpop.permute.xlu0 %936
        %938 = vrot.lane.b32.xlu0 %v478, 108
        %v939 = vpop.permute.xlu0 %938
        %940 = vrot.lane.b32.xlu0 %v479, 108
        %v941 = vpop.permute.xlu0 %940
        %942 = vrot.lane.b32.xlu0 %v480, 108
        %v943 = vpop.permute.xlu0 %942
        %vm944 = vcmask 883712
        %v945 = vsel %vm944, %v935, %v937
        %v946 = vsel %vm944, %v937, %v939
        %v947 = vsel %vm944, %v939, %v941
        %v948 = vsel %vm944, %v941, %v943
        %v954 = vsel %vm500, %v933, 0
        %956 = vmatpush.bf16.msra.mxu0 0
        %957 = vmatpush.bf16.msra.mxu0 0
        %958 = vmatpush.bf16.msra.mxu0 0
        %959 = vmatpush.bf16.msra.mxu0 0
        %960 = vmatpush.bf16.msra.mxu0 0
        %961 = vmatpush.bf16.msra.mxu0 0
        %962 = vmatpush.bf16.msra.mxu0 0
        %963 = vmatpush.bf16.msra.mxu0 %v945
        %964 = vmatmul.bf16.gmra.mxu0 %v954
        %v965 = vpop.f32.mrf.mxu0
        %v966 = vadd.f32 0.0, %v965
        %v967 = vpop.f32.mrf.mxu0
        %v968 = vadd.f32 0.0, %v967
        %969 = vdwg.mxu0
        %970 = vmatpush.bf16.msra.mxu0 0
        %971 = vmatpush.bf16.msra.mxu0 0
        %972 = vmatpush.bf16.msra.mxu0 0
        %973 = vmatpush.bf16.msra.mxu0 0
        %974 = vmatpush.bf16.msra.mxu0 0
        %975 = vmatpush.bf16.msra.mxu0 0
        %976 = vmatpush.bf16.msra.mxu0 0
        %977 = vmatpush.bf16.msra.mxu0 %v946
        %978 = vmatmul.bf16.gmra.mxu0 %v954
        %v979 = vpop.f32.mrf.mxu0
        %v980 = vadd.f32 0.0, %v979
        %v981 = vpop.f32.mrf.mxu0
        %v982 = vadd.f32 0.0, %v981
        %983 = vdwg.mxu0
        %984 = vmatpush.bf16.msra.mxu0 0
        %985 = vmatpush.bf16.msra.mxu0 0
        %986 = vmatpush.bf16.msra.mxu0 0
        %987 = vmatpush.bf16.msra.mxu0 0
        %988 = vmatpush.bf16.msra.mxu0 0
        %989 = vmatpush.bf16.msra.mxu0 0
        %990 = vmatpush.bf16.msra.mxu0 0
        %991 = vmatpush.bf16.msra.mxu0 %v947
        %992 = vmatmul.bf16.gmra.mxu0 %v954
        %v993 = vpop.f32.mrf.mxu0
        %v994 = vadd.f32 0.0, %v993
        %v995 = vpop.f32.mrf.mxu0
        %v996 = vadd.f32 0.0, %v995
        %997 = vdwg.mxu0
        %998 = vmatpush.bf16.msra.mxu0 0
        %999 = vmatpush.bf16.msra.mxu0 0
        %1000 = vmatpush.bf16.msra.mxu0 0
        %1001 = vmatpush.bf16.msra.mxu0 0
        %1002 = vmatpush.bf16.msra.mxu0 0
        %1003 = vmatpush.bf16.msra.mxu0 0
        %1004 = vmatpush.bf16.msra.mxu0 0
        %1005 = vmatpush.bf16.msra.mxu0 %v948
        %1006 = vmatmul.bf16.gmra.mxu0 %v954
        %v1007 = vpop.f32.mrf.mxu0
        %v1008 = vadd.f32 0.0, %v1007
        %v1009 = vpop.f32.mrf.mxu0
        %v1010 = vadd.f32 0.0, %v1009
        %1011 = vdwg.mxu0
        %v1012 = vadd.f32 %v918, %v966
        %v1013 = vadd.f32 %v919, %v980
        %v1014 = vadd.f32 %v920, %v994
        %v1015 = vadd.f32 %v921, %v1008
        %v1016 = vadd.f32 %v922, %v968
        %v1017 = vadd.f32 %v923, %v982
        %v1018 = vadd.f32 %v924, %v996
        %v1019 = vadd.f32 %v925, %v1010
        %s1020 = scalar_lea.vmem [#allocation7], 48
        %v1021 = vld [vmem:[%s1020] sm:$0xf]
        %v1022 = vld [vmem:[%s1020 + $0x4] sm:$0xf]
        %v1025 = vunpack.c.l.b16 %v1021
        %v1026 = vunpack.c.l.b16 %v1022
        %v1027 = vpack.c.b16 %v1026, %v1025
        %1028 = vrot.lane.b32.xlu0 %v476, 92
        %v1029 = vpop.permute.xlu0 %1028
        %1030 = vrot.lane.b32.xlu0 %v477, 92
        %v1031 = vpop.permute.xlu0 %1030
        %1032 = vrot.lane.b32.xlu0 %v478, 92
        %v1033 = vpop.permute.xlu0 %1032
        %1034 = vrot.lane.b32.xlu0 %v479, 92
        %v1035 = vpop.permute.xlu0 %1034
        %1036 = vrot.lane.b32.xlu0 %v480, 92
        %v1037 = vpop.permute.xlu0 %1036
        %vm1038 = vcmask 752640
        %v1039 = vsel %vm1038, %v1029, %v1031
        %v1040 = vsel %vm1038, %v1031, %v1033
        %v1041 = vsel %vm1038, %v1033, %v1035
        %v1042 = vsel %vm1038, %v1035, %v1037
        %v1048 = vsel %vm500, %v1027, 0
        %1050 = vmatpush.bf16.msra.mxu0 0
        %1051 = vmatpush.bf16.msra.mxu0 0
        %1052 = vmatpush.bf16.msra.mxu0 0
        %1053 = vmatpush.bf16.msra.mxu0 0
        %1054 = vmatpush.bf16.msra.mxu0 0
        %1055 = vmatpush.bf16.msra.mxu0 0
        %1056 = vmatpush.bf16.msra.mxu0 0
        %1057 = vmatpush.bf16.msra.mxu0 %v1039
        %1058 = vmatmul.bf16.gmra.mxu0 %v1048
        %v1059 = vpop.f32.mrf.mxu0
        %v1060 = vadd.f32 0.0, %v1059
        %v1061 = vpop.f32.mrf.mxu0
        %v1062 = vadd.f32 0.0, %v1061
        %1063 = vdwg.mxu0
        %1064 = vmatpush.bf16.msra.mxu0 0
        %1065 = vmatpush.bf16.msra.mxu0 0
        %1066 = vmatpush.bf16.msra.mxu0 0
        %1067 = vmatpush.bf16.msra.mxu0 0
        %1068 = vmatpush.bf16.msra.mxu0 0
        %1069 = vmatpush.bf16.msra.mxu0 0
        %1070 = vmatpush.bf16.msra.mxu0 0
        %1071 = vmatpush.bf16.msra.mxu0 %v1040
        %1072 = vmatmul.bf16.gmra.mxu0 %v1048
        %v1073 = vpop.f32.mrf.mxu0
        %v1074 = vadd.f32 0.0, %v1073
        %v1075 = vpop.f32.mrf.mxu0
        %v1076 = vadd.f32 0.0, %v1075
        %1077 = vdwg.mxu0
        %1078 = vmatpush.bf16.msra.mxu0 0
        %1079 = vmatpush.bf16.msra.mxu0 0
        %1080 = vmatpush.bf16.msra.mxu0 0
        %1081 = vmatpush.bf16.msra.mxu0 0
        %1082 = vmatpush.bf16.msra.mxu0 0
        %1083 = vmatpush.bf16.msra.mxu0 0
        %1084 = vmatpush.bf16.msra.mxu0 0
        %1085 = vmatpush.bf16.msra.mxu0 %v1041
        %1086 = vmatmul.bf16.gmra.mxu0 %v1048
        %v1087 = vpop.f32.mrf.mxu0
        %v1088 = vadd.f32 0.0, %v1087
        %v1089 = vpop.f32.mrf.mxu0
        %v1090 = vadd.f32 0.0, %v1089
        %1091 = vdwg.mxu0
        %1092 = vmatpush.bf16.msra.mxu0 0
        %1093 = vmatpush.bf16.msra.mxu0 0
        %1094 = vmatpush.bf16.msra.mxu0 0
        %1095 = vmatpush.bf16.msra.mxu0 0
        %1096 = vmatpush.bf16.msra.mxu0 0
        %1097 = vmatpush.bf16.msra.mxu0 0
        %1098 = vmatpush.bf16.msra.mxu0 0
        %1099 = vmatpush.bf16.msra.mxu0 %v1042
        %1100 = vmatmul.bf16.gmra.mxu0 %v1048
        %v1101 = vpop.f32.mrf.mxu0
        %v1102 = vadd.f32 0.0, %v1101
        %v1103 = vpop.f32.mrf.mxu0
        %v1104 = vadd.f32 0.0, %v1103
        %1105 = vdwg.mxu0
        %v1106 = vadd.f32 %v1012, %v1060
        %v1107 = vadd.f32 %v1013, %v1074
        %v1108 = vadd.f32 %v1014, %v1088
        %v1109 = vadd.f32 %v1015, %v1102
        %v1110 = vadd.f32 %v1016, %v1062
        %v1111 = vadd.f32 %v1017, %v1076
        %v1112 = vadd.f32 %v1018, %v1090
        %v1113 = vadd.f32 %v1019, %v1104
        %s1114 = scalar_lea.vmem [#allocation7], 56
        %v1115 = vld [vmem:[%s1114] sm:$0xf]
        %v1116 = vld [vmem:[%s1114 + $0x4] sm:$0xf]
        %v1119 = vunpack.c.l.b16 %v1115
        %v1120 = vunpack.c.l.b16 %v1116
        %v1121 = vpack.c.b16 %v1120, %v1119
        %1122 = vrot.lane.b32.xlu0 %v476, 91
        %v1123 = vpop.permute.xlu0 %1122
        %1124 = vrot.lane.b32.xlu0 %v477, 91
        %v1125 = vpop.permute.xlu0 %1124
        %1126 = vrot.lane.b32.xlu0 %v478, 91
        %v1127 = vpop.permute.xlu0 %1126
        %1128 = vrot.lane.b32.xlu0 %v479, 91
        %v1129 = vpop.permute.xlu0 %1128
        %1130 = vrot.lane.b32.xlu0 %v480, 91
        %v1131 = vpop.permute.xlu0 %1130
        %vm1132 = vcmask 744448
        %v1133 = vsel %vm1132, %v1123, %v1125
        %v1134 = vsel %vm1132, %v1125, %v1127
        %v1135 = vsel %vm1132, %v1127, %v1129
        %v1136 = vsel %vm1132, %v1129, %v1131
        %v1142 = vsel %vm500, %v1121, 0
        %1144 = vmatpush.bf16.msra.mxu0 0
        %1145 = vmatpush.bf16.msra.mxu0 0
        %1146 = vmatpush.bf16.msra.mxu0 0
        %1147 = vmatpush.bf16.msra.mxu0 0
        %1148 = vmatpush.bf16.msra.mxu0 0
        %1149 = vmatpush.bf16.msra.mxu0 0
        %1150 = vmatpush.bf16.msra.mxu0 0
        %1151 = vmatpush.bf16.msra.mxu0 %v1133
        %1152 = vmatmul.bf16.gmra.mxu0 %v1142
        %v1153 = vpop.f32.mrf.mxu0
        %v1154 = vadd.f32 0.0, %v1153
        %v1155 = vpop.f32.mrf.mxu0
        %v1156 = vadd.f32 0.0, %v1155
        %1157 = vdwg.mxu0
        %1158 = vmatpush.bf16.msra.mxu0 0
        %1159 = vmatpush.bf16.msra.mxu0 0
        %1160 = vmatpush.bf16.msra.mxu0 0
        %1161 = vmatpush.bf16.msra.mxu0 0
        %1162 = vmatpush.bf16.msra.mxu0 0
        %1163 = vmatpush.bf16.msra.mxu0 0
        %1164 = vmatpush.bf16.msra.mxu0 0
        %1165 = vmatpush.bf16.msra.mxu0 %v1134
        %1166 = vmatmul.bf16.gmra.mxu0 %v1142
        %v1167 = vpop.f32.mrf.mxu0
        %v1168 = vadd.f32 0.0, %v1167
        %v1169 = vpop.f32.mrf.mxu0
        %v1170 = vadd.f32 0.0, %v1169
        %1171 = vdwg.mxu0
        %1172 = vmatpush.bf16.msra.mxu0 0
        %1173 = vmatpush.bf16.msra.mxu0 0
        %1174 = vmatpush.bf16.msra.mxu0 0
        %1175 = vmatpush.bf16.msra.mxu0 0
        %1176 = vmatpush.bf16.msra.mxu0 0
        %1177 = vmatpush.bf16.msra.mxu0 0
        %1178 = vmatpush.bf16.msra.mxu0 0
        %1179 = vmatpush.bf16.msra.mxu0 %v1135
        %1180 = vmatmul.bf16.gmra.mxu0 %v1142
        %v1181 = vpop.f32.mrf.mxu0
        %v1182 = vadd.f32 0.0, %v1181
        %v1183 = vpop.f32.mrf.mxu0
        %v1184 = vadd.f32 0.0, %v1183
        %1185 = vdwg.mxu0
        %1186 = vmatpush.bf16.msra.mxu0 0
        %1187 = vmatpush.bf16.msra.mxu0 0
        %1188 = vmatpush.bf16.msra.mxu0 0
        %1189 = vmatpush.bf16.msra.mxu0 0
        %1190 = vmatpush.bf16.msra.mxu0 0
        %1191 = vmatpush.bf16.msra.mxu0 0
        %1192 = vmatpush.bf16.msra.mxu0 0
        %1193 = vmatpush.bf16.msra.mxu0 %v1136
        %1194 = vmatmul.bf16.gmra.mxu0 %v1142
        %v1195 = vpop.f32.mrf.mxu0
        %v1196 = vadd.f32 0.0, %v1195
        %v1197 = vpop.f32.mrf.mxu0
        %v1198 = vadd.f32 0.0, %v1197
        %1199 = vdwg.mxu0
        %v1200 = vadd.f32 %v1106, %v1154
        %v1201 = vadd.f32 %v1107, %v1168
        %v1202 = vadd.f32 %v1108, %v1182
        %v1203 = vadd.f32 %v1109, %v1196
        %v1204 = vadd.f32 %v1110, %v1156
        %v1205 = vadd.f32 %v1111, %v1170
        %v1206 = vadd.f32 %v1112, %v1184
        %v1207 = vadd.f32 %v1113, %v1198
        %s1208 = scalar_lea.vmem [#allocation7], 64
        %v1209 = vld [vmem:[%s1208] sm:$0xf]
        %v1210 = vld [vmem:[%s1208 + $0x4] sm:$0xf]
        %v1213 = vunpack.c.l.b16 %v1209
        %v1214 = vunpack.c.l.b16 %v1210
        %v1215 = vpack.c.b16 %v1214, %v1213
        %1216 = vrot.lane.b32.xlu0 %v476, 90
        %v1217 = vpop.permute.xlu0 %1216
        %1218 = vrot.lane.b32.xlu0 %v477, 90
        %v1219 = vpop.permute.xlu0 %1218
        %1220 = vrot.lane.b32.xlu0 %v478, 90
        %v1221 = vpop.permute.xlu0 %1220
        %1222 = vrot.lane.b32.xlu0 %v479, 90
        %v1223 = vpop.permute.xlu0 %1222
        %1224 = vrot.lane.b32.xlu0 %v480, 90
        %v1225 = vpop.permute.xlu0 %1224
        %vm1226 = vcmask 736256
        %v1227 = vsel %vm1226, %v1217, %v1219
        %v1228 = vsel %vm1226, %v1219, %v1221
        %v1229 = vsel %vm1226, %v1221, %v1223
        %v1230 = vsel %vm1226, %v1223, %v1225
        %v1236 = vsel %vm500, %v1215, 0
        %1238 = vmatpush.bf16.msra.mxu0 0
        %1239 = vmatpush.bf16.msra.mxu0 0
        %1240 = vmatpush.bf16.msra.mxu0 0
        %1241 = vmatpush.bf16.msra.mxu0 0
        %1242 = vmatpush.bf16.msra.mxu0 0
        %1243 = vmatpush.bf16.msra.mxu0 0
        %1244 = vmatpush.bf16.msra.mxu0 0
        %1245 = vmatpush.bf16.msra.mxu0 %v1227
        %1246 = vmatmul.bf16.gmra.mxu0 %v1236
        %v1247 = vpop.f32.mrf.mxu0
        %v1248 = vadd.f32 0.0, %v1247
        %v1249 = vpop.f32.mrf.mxu0
        %v1250 = vadd.f32 0.0, %v1249
        %1251 = vdwg.mxu0
        %1252 = vmatpush.bf16.msra.mxu0 0
        %1253 = vmatpush.bf16.msra.mxu0 0
        %1254 = vmatpush.bf16.msra.mxu0 0
        %1255 = vmatpush.bf16.msra.mxu0 0
        %1256 = vmatpush.bf16.msra.mxu0 0
        %1257 = vmatpush.bf16.msra.mxu0 0
        %1258 = vmatpush.bf16.msra.mxu0 0
        %1259 = vmatpush.bf16.msra.mxu0 %v1228
        %1260 = vmatmul.bf16.gmra.mxu0 %v1236
        %v1261 = vpop.f32.mrf.mxu0
        %v1262 = vadd.f32 0.0, %v1261
        %v1263 = vpop.f32.mrf.mxu0
        %v1264 = vadd.f32 0.0, %v1263
        %1265 = vdwg.mxu0
        %1266 = vmatpush.bf16.msra.mxu0 0
        %1267 = vmatpush.bf16.msra.mxu0 0
        %1268 = vmatpush.bf16.msra.mxu0 0
        %1269 = vmatpush.bf16.msra.mxu0 0
        %1270 = vmatpush.bf16.msra.mxu0 0
        %1271 = vmatpush.bf16.msra.mxu0 0
        %1272 = vmatpush.bf16.msra.mxu0 0
        %1273 = vmatpush.bf16.msra.mxu0 %v1229
        %1274 = vmatmul.bf16.gmra.mxu0 %v1236
        %v1275 = vpop.f32.mrf.mxu0
        %v1276 = vadd.f32 0.0, %v1275
        %v1277 = vpop.f32.mrf.mxu0
        %v1278 = vadd.f32 0.0, %v1277
        %1279 = vdwg.mxu0
        %1280 = vmatpush.bf16.msra.mxu0 0
        %1281 = vmatpush.bf16.msra.mxu0 0
        %1282 = vmatpush.bf16.msra.mxu0 0
        %1283 = vmatpush.bf16.msra.mxu0 0
        %1284 = vmatpush.bf16.msra.mxu0 0
        %1285 = vmatpush.bf16.msra.mxu0 0
        %1286 = vmatpush.bf16.msra.mxu0 0
        %1287 = vmatpush.bf16.msra.mxu0 %v1230
        %1288 = vmatmul.bf16.gmra.mxu0 %v1236
        %v1289 = vpop.f32.mrf.mxu0
        %v1290 = vadd.f32 0.0, %v1289
        %v1291 = vpop.f32.mrf.mxu0
        %v1292 = vadd.f32 0.0, %v1291
        %1293 = vdwg.mxu0
        %v1294 = vadd.f32 %v1200, %v1248
        %v1295 = vadd.f32 %v1201, %v1262
        %v1296 = vadd.f32 %v1202, %v1276
        %v1297 = vadd.f32 %v1203, %v1290
        %v1298 = vadd.f32 %v1204, %v1250
        %v1299 = vadd.f32 %v1205, %v1264
        %v1300 = vadd.f32 %v1206, %v1278
        %v1301 = vadd.f32 %v1207, %v1292
        %v1302 = vmul.f32 %v1294, %v365
        %v1303 = vmul.f32 %v1295, %v365
        %v1304 = vmul.f32 %v1296, %v365
        %v1305 = vmul.f32 %v1297, %v365
        %v1306 = vmul.f32 %v1298, %v370
        %v1307 = vmul.f32 %v1299, %v370
        %v1308 = vmul.f32 %v1300, %v370
        %v1309 = vmul.f32 %v1301, %v370
        %v1310 = vadd.f32 %v1302, %v377
        %v1311 = vadd.f32 %v1303, %v377
        %v1312 = vadd.f32 %v1304, %v377
        %v1313 = vadd.f32 %v1305, %v377
        %v1314 = vadd.f32 %v1306, %v382
        %v1315 = vadd.f32 %v1307, %v382
        %v1316 = vadd.f32 %v1308, %v382
        %v1317 = vadd.f32 %v1309, %v382
        %v1318 = vmax.f32 %v1310, 0.0
        %v1319 = vmax.f32 %v1311, 0.0
        %v1320 = vmax.f32 %v1312, 0.0
        %v1321 = vmax.f32 %v1313, 0.0
        %v1322 = vmax.f32 %v1314, 0.0
        %v1323 = vmax.f32 %v1315, 0.0
        %v1324 = vmax.f32 %v1316, 0.0
        %v1325 = vmax.f32 %v1317, 0.0
        %v1326 = vmul.f32 %v1318, %v386
        %v1327 = vmul.f32 %v1319, %v387
        %v1328 = vmul.f32 %v1320, %v388
        %v1329 = vmul.f32 %v1321, %v389
        %v1330 = vmul.f32 %v1322, %v386
        %v1331 = vmul.f32 %v1323, %v387
        %v1332 = vmul.f32 %v1324, %v388
        %v1333 = vmul.f32 %v1325, %v389
        %v1334 = vpack.c.bf16 %v1327, %v1326
        %v1335 = vpack.c.bf16 %v1329, %v1328
        %v1336 = vpack.c.bf16 %v1331, %v1330
        %v1337 = vpack.c.bf16 %v1333, %v1332
        %1338 = vst [vmem:[#allocation3] sm:$0xff] %v1334
        %1339 = vst [vmem:[#allocation3 + $0x8] sm:$0xff] %v1335
        %1340 = vst [vmem:[#allocation3 + $0x10] sm:$0xff] %v1336
        %1341 = vst [vmem:[#allocation3 + $0x18] sm:$0xff] %v1337
        %v1342 = vld [vmem:[#allocation9] sm:$0xf]
        %v1343 = vld [vmem:[#allocation9 + $0x4] sm:$0xf]
        %v1344 = vld [vmem:[#allocation3] sm:$0xff]
        %v1345 = vld [vmem:[#allocation3 + $0x8] sm:$0xf]
        %v1346 = vld [vmem:[#allocation3 + $0x10] sm:$0xff]
        %v1347 = vld [vmem:[#allocation3 + $0x18] sm:$0xf]
        %s1348 = scalar_lea.vmem [#allocation9], 8
        %v1349 = vld [vmem:[%s1348] sm:$0xf]
        %v1350 = vld [vmem:[%s1348 + $0x4] sm:$0xf]
        %v1351 = vld [vmem:[#allocation3] sm:$0xff]
        %v1352 = vld [vmem:[#allocation3 + $0x8] sm:$0xff]
        %v1353 = vld [vmem:[#allocation3 + $0x10] sm:$0xff]
        %v1354 = vld [vmem:[#allocation3 + $0x18] sm:$0xff]
        %v1357 = vunpack.c.l.b16 %v1349
        %v1358 = vunpack.c.l.b16 %v1350
        %v1359 = vpack.c.b16 %v1358, %v1357
        %v1364 = vunpack.c.l.b16 %v1351
        %v1365 = vunpack.c.h.b16 %v1351
        %v1366 = vunpack.c.l.b16 %v1352
        %v1367 = vunpack.c.h.b16 %v1352
        %v1368 = vunpack.c.l.b16 %v1353
        %v1369 = vunpack.c.h.b16 %v1353
        %v1370 = vunpack.c.l.b16 %v1354
        %v1371 = vunpack.c.h.b16 %v1354
        %v1372 = vpack.c.b16 %v1368, %v1364
        %v1373 = vpack.c.b16 %v1369, %v1365
        %v1374 = vpack.c.b16 %v1370, %v1366
        %v1375 = vpack.c.b16 %v1371, %v1367
        %1376 = vrot.lane.b32.xlu0 %v1372, 127
        %v1377 = vpop.permute.xlu0 %1376
        %1378 = vrot.lane.b32.xlu0 %v1373, 127
        %v1379 = vpop.permute.xlu0 %1378
        %1380 = vrot.lane.b32.xlu0 %v1374, 127
        %v1381 = vpop.permute.xlu0 %1380
        %1382 = vrot.lane.b32.xlu0 %v1375, 127
        %v1383 = vpop.permute.xlu0 %1382
        %v1384 = vsel %vm491, %v1377, %v1379
        %v1385 = vsel %vm491, %v1379, %v1381
        %v1386 = vsel %vm491, %v1381, %v1383
        %v1391 = vsel %vm500, %v1359, 0
        %1393 = vmatpush.bf16.msra.mxu0 0
        %1394 = vmatpush.bf16.msra.mxu0 0
        %1395 = vmatpush.bf16.msra.mxu0 0
        %1396 = vmatpush.bf16.msra.mxu0 0
        %1397 = vmatpush.bf16.msra.mxu0 0
        %1398 = vmatpush.bf16.msra.mxu0 0
        %1399 = vmatpush.bf16.msra.mxu0 0
        %1400 = vmatpush.bf16.msra.mxu0 %v1384
        %1401 = vmatmul.bf16.gmra.mxu0 %v1391
        %v1402 = vpop.f32.mrf.mxu0
        %v1403 = vadd.f32 0.0, %v1402
        %v1404 = vpop.f32.mrf.mxu0
        %v1405 = vadd.f32 0.0, %v1404
        %1406 = vdwg.mxu0
        %1407 = vmatpush.bf16.msra.mxu0 0
        %1408 = vmatpush.bf16.msra.mxu0 0
        %1409 = vmatpush.bf16.msra.mxu0 0
        %1410 = vmatpush.bf16.msra.mxu0 0
        %1411 = vmatpush.bf16.msra.mxu0 0
        %1412 = vmatpush.bf16.msra.mxu0 0
        %1413 = vmatpush.bf16.msra.mxu0 0
        %1414 = vmatpush.bf16.msra.mxu0 %v1385
        %1415 = vmatmul.bf16.gmra.mxu0 %v1391
        %v1416 = vpop.f32.mrf.mxu0
        %v1417 = vadd.f32 0.0, %v1416
        %v1418 = vpop.f32.mrf.mxu0
        %v1419 = vadd.f32 0.0, %v1418
        %1420 = vdwg.mxu0
        %1421 = vmatpush.bf16.msra.mxu0 0
        %1422 = vmatpush.bf16.msra.mxu0 0
        %1423 = vmatpush.bf16.msra.mxu0 0
        %1424 = vmatpush.bf16.msra.mxu0 0
        %1425 = vmatpush.bf16.msra.mxu0 0
        %1426 = vmatpush.bf16.msra.mxu0 0
        %1427 = vmatpush.bf16.msra.mxu0 0
        %1428 = vmatpush.bf16.msra.mxu0 %v1386
        %1429 = vmatmul.bf16.gmra.mxu0 %v1391
        %v1430 = vpop.f32.mrf.mxu0
        %v1431 = vadd.f32 0.0, %v1430
        %v1432 = vpop.f32.mrf.mxu0
        %v1433 = vadd.f32 0.0, %v1432
        %1434 = vdwg.mxu0
        %v1437 = vunpack.c.l.b16 %v1342
        %v1438 = vunpack.c.l.b16 %v1343
        %v1439 = vpack.c.b16 %v1438, %v1437
        %v1444 = vunpack.c.l.b16 %v1344
        %v1445 = vunpack.c.h.b16 %v1344
        %v1446 = vunpack.c.l.b16 %v1345
        %v1447 = vunpack.c.l.b16 %v1346
        %v1448 = vunpack.c.h.b16 %v1346
        %v1449 = vunpack.c.l.b16 %v1347
        %v1450 = vpack.c.b16 %v1447, %v1444
        %v1451 = vpack.c.b16 %v1448, %v1445
        %v1452 = vpack.c.b16 %v1449, %v1446
        %v1457 = vsel %vm500, %v1439, 0
        %1459 = vmatpush.bf16.msra.mxu0 0
        %1460 = vmatpush.bf16.msra.mxu0 0
        %1461 = vmatpush.bf16.msra.mxu0 0
        %1462 = vmatpush.bf16.msra.mxu0 0
        %1463 = vmatpush.bf16.msra.mxu0 0
        %1464 = vmatpush.bf16.msra.mxu0 0
        %1465 = vmatpush.bf16.msra.mxu0 0
        %1466 = vmatpush.bf16.msra.mxu0 %v1450
        %1467 = vmatmul.bf16.gmra.mxu0 %v1457
        %v1468 = vpop.f32.mrf.mxu0
        %v1469 = vadd.f32 %v1403, %v1468
        %v1470 = vpop.f32.mrf.mxu0
        %v1471 = vadd.f32 %v1405, %v1470
        %1472 = vdwg.mxu0
        %1473 = vmatpush.bf16.msra.mxu0 0
        %1474 = vmatpush.bf16.msra.mxu0 0
        %1475 = vmatpush.bf16.msra.mxu0 0
        %1476 = vmatpush.bf16.msra.mxu0 0
        %1477 = vmatpush.bf16.msra.mxu0 0
        %1478 = vmatpush.bf16.msra.mxu0 0
        %1479 = vmatpush.bf16.msra.mxu0 0
        %1480 = vmatpush.bf16.msra.mxu0 %v1451
        %1481 = vmatmul.bf16.gmra.mxu0 %v1457
        %v1482 = vpop.f32.mrf.mxu0
        %v1483 = vadd.f32 %v1417, %v1482
        %v1484 = vpop.f32.mrf.mxu0
        %v1485 = vadd.f32 %v1419, %v1484
        %1486 = vdwg.mxu0
        %1487 = vmatpush.bf16.msra.mxu0 0
        %1488 = vmatpush.bf16.msra.mxu0 0
        %1489 = vmatpush.bf16.msra.mxu0 0
        %1490 = vmatpush.bf16.msra.mxu0 0
        %1491 = vmatpush.bf16.msra.mxu0 0
        %1492 = vmatpush.bf16.msra.mxu0 0
        %1493 = vmatpush.bf16.msra.mxu0 0
        %1494 = vmatpush.bf16.msra.mxu0 %v1452
        %1495 = vmatmul.bf16.gmra.mxu0 %v1457
        %v1496 = vpop.f32.mrf.mxu0
        %v1497 = vadd.f32 %v1431, %v1496
        %v1498 = vpop.f32.mrf.mxu0
        %v1499 = vadd.f32 %v1433, %v1498
        %1500 = vdwg.mxu0
        %s1501 = scalar_lea.vmem [#allocation9], 16
        %v1502 = vld [vmem:[%s1501] sm:$0xf]
        %v1503 = vld [vmem:[%s1501 + $0x4] sm:$0xf]
        %v1506 = vunpack.c.l.b16 %v1502
        %v1507 = vunpack.c.l.b16 %v1503
        %v1508 = vpack.c.b16 %v1507, %v1506
        %1509 = vrot.lane.b32.xlu0 %v1372, 126
        %v1510 = vpop.permute.xlu0 %1509
        %1511 = vrot.lane.b32.xlu0 %v1373, 126
        %v1512 = vpop.permute.xlu0 %1511
        %1513 = vrot.lane.b32.xlu0 %v1374, 126
        %v1514 = vpop.permute.xlu0 %1513
        %1515 = vrot.lane.b32.xlu0 %v1375, 126
        %v1516 = vpop.permute.xlu0 %1515
        %v1517 = vsel %vm662, %v1510, %v1512
        %v1518 = vsel %vm662, %v1512, %v1514
        %v1519 = vsel %vm662, %v1514, %v1516
        %v1524 = vsel %vm500, %v1508, 0
        %1526 = vmatpush.bf16.msra.mxu0 0
        %1527 = vmatpush.bf16.msra.mxu0 0
        %1528 = vmatpush.bf16.msra.mxu0 0
        %1529 = vmatpush.bf16.msra.mxu0 0
        %1530 = vmatpush.bf16.msra.mxu0 0
        %1531 = vmatpush.bf16.msra.mxu0 0
        %1532 = vmatpush.bf16.msra.mxu0 0
        %1533 = vmatpush.bf16.msra.mxu0 %v1517
        %1534 = vmatmul.bf16.gmra.mxu0 %v1524
        %v1535 = vpop.f32.mrf.mxu0
        %v1536 = vadd.f32 0.0, %v1535
        %v1537 = vpop.f32.mrf.mxu0
        %v1538 = vadd.f32 0.0, %v1537
        %1539 = vdwg.mxu0
        %1540 = vmatpush.bf16.msra.mxu0 0
        %1541 = vmatpush.bf16.msra.mxu0 0
        %1542 = vmatpush.bf16.msra.mxu0 0
        %1543 = vmatpush.bf16.msra.mxu0 0
        %1544 = vmatpush.bf16.msra.mxu0 0
        %1545 = vmatpush.bf16.msra.mxu0 0
        %1546 = vmatpush.bf16.msra.mxu0 0
        %1547 = vmatpush.bf16.msra.mxu0 %v1518
        %1548 = vmatmul.bf16.gmra.mxu0 %v1524
        %v1549 = vpop.f32.mrf.mxu0
        %v1550 = vadd.f32 0.0, %v1549
        %v1551 = vpop.f32.mrf.mxu0
        %v1552 = vadd.f32 0.0, %v1551
        %1553 = vdwg.mxu0
        %1554 = vmatpush.bf16.msra.mxu0 0
        %1555 = vmatpush.bf16.msra.mxu0 0
        %1556 = vmatpush.bf16.msra.mxu0 0
        %1557 = vmatpush.bf16.msra.mxu0 0
        %1558 = vmatpush.bf16.msra.mxu0 0
        %1559 = vmatpush.bf16.msra.mxu0 0
        %1560 = vmatpush.bf16.msra.mxu0 0
        %1561 = vmatpush.bf16.msra.mxu0 %v1519
        %1562 = vmatmul.bf16.gmra.mxu0 %v1524
        %v1563 = vpop.f32.mrf.mxu0
        %v1564 = vadd.f32 0.0, %v1563
        %v1565 = vpop.f32.mrf.mxu0
        %v1566 = vadd.f32 0.0, %v1565
        %1567 = vdwg.mxu0
        %v1568 = vadd.f32 %v1469, %v1536
        %v1569 = vadd.f32 %v1483, %v1550
        %v1570 = vadd.f32 %v1497, %v1564
        %v1571 = vadd.f32 %v1471, %v1538
        %v1572 = vadd.f32 %v1485, %v1552
        %v1573 = vadd.f32 %v1499, %v1566
        %s1574 = scalar_lea.vmem [#allocation9], 24
        %v1575 = vld [vmem:[%s1574] sm:$0xf]
        %v1576 = vld [vmem:[%s1574 + $0x4] sm:$0xf]
        %v1579 = vunpack.c.l.b16 %v1575
        %v1580 = vunpack.c.l.b16 %v1576
        %v1581 = vpack.c.b16 %v1580, %v1579
        %1582 = vrot.lane.b32.xlu0 %v1372, 110
        %v1583 = vpop.permute.xlu0 %1582
        %1584 = vrot.lane.b32.xlu0 %v1373, 110
        %v1585 = vpop.permute.xlu0 %1584
        %1586 = vrot.lane.b32.xlu0 %v1374, 110
        %v1587 = vpop.permute.xlu0 %1586
        %1588 = vrot.lane.b32.xlu0 %v1375, 110
        %v1589 = vpop.permute.xlu0 %1588
        %v1590 = vsel %vm756, %v1583, %v1585
        %v1591 = vsel %vm756, %v1585, %v1587
        %v1592 = vsel %vm756, %v1587, %v1589
        %v1597 = vsel %vm500, %v1581, 0
        %1599 = vmatpush.bf16.msra.mxu0 0
        %1600 = vmatpush.bf16.msra.mxu0 0
        %1601 = vmatpush.bf16.msra.mxu0 0
        %1602 = vmatpush.bf16.msra.mxu0 0
        %1603 = vmatpush.bf16.msra.mxu0 0
        %1604 = vmatpush.bf16.msra.mxu0 0
        %1605 = vmatpush.bf16.msra.mxu0 0
        %1606 = vmatpush.bf16.msra.mxu0 %v1590
        %1607 = vmatmul.bf16.gmra.mxu0 %v1597
        %v1608 = vpop.f32.mrf.mxu0
        %v1609 = vadd.f32 0.0, %v1608
        %v1610 = vpop.f32.mrf.mxu0
        %v1611 = vadd.f32 0.0, %v1610
        %1612 = vdwg.mxu0
        %1613 = vmatpush.bf16.msra.mxu0 0
        %1614 = vmatpush.bf16.msra.mxu0 0
        %1615 = vmatpush.bf16.msra.mxu0 0
        %1616 = vmatpush.bf16.msra.mxu0 0
        %1617 = vmatpush.bf16.msra.mxu0 0
        %1618 = vmatpush.bf16.msra.mxu0 0
        %1619 = vmatpush.bf16.msra.mxu0 0
        %1620 = vmatpush.bf16.msra.mxu0 %v1591
        %1621 = vmatmul.bf16.gmra.mxu0 %v1597
        %v1622 = vpop.f32.mrf.mxu0
        %v1623 = vadd.f32 0.0, %v1622
        %v1624 = vpop.f32.mrf.mxu0
        %v1625 = vadd.f32 0.0, %v1624
        %1626 = vdwg.mxu0
        %1627 = vmatpush.bf16.msra.mxu0 0
        %1628 = vmatpush.bf16.msra.mxu0 0
        %1629 = vmatpush.bf16.msra.mxu0 0
        %1630 = vmatpush.bf16.msra.mxu0 0
        %1631 = vmatpush.bf16.msra.mxu0 0
        %1632 = vmatpush.bf16.msra.mxu0 0
        %1633 = vmatpush.bf16.msra.mxu0 0
        %1634 = vmatpush.bf16.msra.mxu0 %v1592
        %1635 = vmatmul.bf16.gmra.mxu0 %v1597
        %v1636 = vpop.f32.mrf.mxu0
        %v1637 = vadd.f32 0.0, %v1636
        %v1638 = vpop.f32.mrf.mxu0
        %v1639 = vadd.f32 0.0, %v1638
        %1640 = vdwg.mxu0
        %v1641 = vadd.f32 %v1568, %v1609
        %v1642 = vadd.f32 %v1569, %v1623
        %v1643 = vadd.f32 %v1570, %v1637
        %v1644 = vadd.f32 %v1571, %v1611
        %v1645 = vadd.f32 %v1572, %v1625
        %v1646 = vadd.f32 %v1573, %v1639
        %s1647 = scalar_lea.vmem [#allocation9], 32
        %v1648 = vld [vmem:[%s1647] sm:$0xf]
        %v1649 = vld [vmem:[%s1647 + $0x4] sm:$0xf]
        %v1652 = vunpack.c.l.b16 %v1648
        %v1653 = vunpack.c.l.b16 %v1649
        %v1654 = vpack.c.b16 %v1653, %v1652
        %1655 = vrot.lane.b32.xlu0 %v1372, 109
        %v1656 = vpop.permute.xlu0 %1655
        %1657 = vrot.lane.b32.xlu0 %v1373, 109
        %v1658 = vpop.permute.xlu0 %1657
        %1659 = vrot.lane.b32.xlu0 %v1374, 109
        %v1660 = vpop.permute.xlu0 %1659
        %1661 = vrot.lane.b32.xlu0 %v1375, 109
        %v1662 = vpop.permute.xlu0 %1661
        %v1663 = vsel %vm850, %v1656, %v1658
        %v1664 = vsel %vm850, %v1658, %v1660
        %v1665 = vsel %vm850, %v1660, %v1662
        %v1670 = vsel %vm500, %v1654, 0
        %1672 = vmatpush.bf16.msra.mxu0 0
        %1673 = vmatpush.bf16.msra.mxu0 0
        %1674 = vmatpush.bf16.msra.mxu0 0
        %1675 = vmatpush.bf16.msra.mxu0 0
        %1676 = vmatpush.bf16.msra.mxu0 0
        %1677 = vmatpush.bf16.msra.mxu0 0
        %1678 = vmatpush.bf16.msra.mxu0 0
        %1679 = vmatpush.bf16.msra.mxu0 %v1663
        %1680 = vmatmul.bf16.gmra.mxu0 %v1670
        %v1681 = vpop.f32.mrf.mxu0
        %v1682 = vadd.f32 0.0, %v1681
        %v1683 = vpop.f32.mrf.mxu0
        %v1684 = vadd.f32 0.0, %v1683
        %1685 = vdwg.mxu0
        %1686 = vmatpush.bf16.msra.mxu0 0
        %1687 = vmatpush.bf16.msra.mxu0 0
        %1688 = vmatpush.bf16.msra.mxu0 0
        %1689 = vmatpush.bf16.msra.mxu0 0
        %1690 = vmatpush.bf16.msra.mxu0 0
        %1691 = vmatpush.bf16.msra.mxu0 0
        %1692 = vmatpush.bf16.msra.mxu0 0
        %1693 = vmatpush.bf16.msra.mxu0 %v1664
        %1694 = vmatmul.bf16.gmra.mxu0 %v1670
        %v1695 = vpop.f32.mrf.mxu0
        %v1696 = vadd.f32 0.0, %v1695
        %v1697 = vpop.f32.mrf.mxu0
        %v1698 = vadd.f32 0.0, %v1697
        %1699 = vdwg.mxu0
        %1700 = vmatpush.bf16.msra.mxu0 0
        %1701 = vmatpush.bf16.msra.mxu0 0
        %1702 = vmatpush.bf16.msra.mxu0 0
        %1703 = vmatpush.bf16.msra.mxu0 0
        %1704 = vmatpush.bf16.msra.mxu0 0
        %1705 = vmatpush.bf16.msra.mxu0 0
        %1706 = vmatpush.bf16.msra.mxu0 0
        %1707 = vmatpush.bf16.msra.mxu0 %v1665
        %1708 = vmatmul.bf16.gmra.mxu0 %v1670
        %v1709 = vpop.f32.mrf.mxu0
        %v1710 = vadd.f32 0.0, %v1709
        %v1711 = vpop.f32.mrf.mxu0
        %v1712 = vadd.f32 0.0, %v1711
        %1713 = vdwg.mxu0
        %v1714 = vadd.f32 %v1641, %v1682
        %v1715 = vadd.f32 %v1642, %v1696
        %v1716 = vadd.f32 %v1643, %v1710
        %v1717 = vadd.f32 %v1644, %v1684
        %v1718 = vadd.f32 %v1645, %v1698
        %v1719 = vadd.f32 %v1646, %v1712
        %s1720 = scalar_lea.vmem [#allocation9], 40
        %v1721 = vld [vmem:[%s1720] sm:$0xf]
        %v1722 = vld [vmem:[%s1720 + $0x4] sm:$0xf]
        %v1725 = vunpack.c.l.b16 %v1721
        %v1726 = vunpack.c.l.b16 %v1722
        %v1727 = vpack.c.b16 %v1726, %v1725
        %1728 = vrot.lane.b32.xlu0 %v1372, 108
        %v1729 = vpop.permute.xlu0 %1728
        %1730 = vrot.lane.b32.xlu0 %v1373, 108
        %v1731 = vpop.permute.xlu0 %1730
        %1732 = vrot.lane.b32.xlu0 %v1374, 108
        %v1733 = vpop.permute.xlu0 %1732
        %1734 = vrot.lane.b32.xlu0 %v1375, 108
        %v1735 = vpop.permute.xlu0 %1734
        %v1736 = vsel %vm944, %v1729, %v1731
        %v1737 = vsel %vm944, %v1731, %v1733
        %v1738 = vsel %vm944, %v1733, %v1735
        %v1743 = vsel %vm500, %v1727, 0
        %1745 = vmatpush.bf16.msra.mxu0 0
        %1746 = vmatpush.bf16.msra.mxu0 0
        %1747 = vmatpush.bf16.msra.mxu0 0
        %1748 = vmatpush.bf16.msra.mxu0 0
        %1749 = vmatpush.bf16.msra.mxu0 0
        %1750 = vmatpush.bf16.msra.mxu0 0
        %1751 = vmatpush.bf16.msra.mxu0 0
        %1752 = vmatpush.bf16.msra.mxu0 %v1736
        %1753 = vmatmul.bf16.gmra.mxu0 %v1743
        %v1754 = vpop.f32.mrf.mxu0
        %v1755 = vadd.f32 0.0, %v1754
        %v1756 = vpop.f32.mrf.mxu0
        %v1757 = vadd.f32 0.0, %v1756
        %1758 = vdwg.mxu0
        %1759 = vmatpush.bf16.msra.mxu0 0
        %1760 = vmatpush.bf16.msra.mxu0 0
        %1761 = vmatpush.bf16.msra.mxu0 0
        %1762 = vmatpush.bf16.msra.mxu0 0
        %1763 = vmatpush.bf16.msra.mxu0 0
        %1764 = vmatpush.bf16.msra.mxu0 0
        %1765 = vmatpush.bf16.msra.mxu0 0
        %1766 = vmatpush.bf16.msra.mxu0 %v1737
        %1767 = vmatmul.bf16.gmra.mxu0 %v1743
        %v1768 = vpop.f32.mrf.mxu0
        %v1769 = vadd.f32 0.0, %v1768
        %v1770 = vpop.f32.mrf.mxu0
        %v1771 = vadd.f32 0.0, %v1770
        %1772 = vdwg.mxu0
        %1773 = vmatpush.bf16.msra.mxu0 0
        %1774 = vmatpush.bf16.msra.mxu0 0
        %1775 = vmatpush.bf16.msra.mxu0 0
        %1776 = vmatpush.bf16.msra.mxu0 0
        %1777 = vmatpush.bf16.msra.mxu0 0
        %1778 = vmatpush.bf16.msra.mxu0 0
        %1779 = vmatpush.bf16.msra.mxu0 0
        %1780 = vmatpush.bf16.msra.mxu0 %v1738
        %1781 = vmatmul.bf16.gmra.mxu0 %v1743
        %v1782 = vpop.f32.mrf.mxu0
        %v1783 = vadd.f32 0.0, %v1782
        %v1784 = vpop.f32.mrf.mxu0
        %v1785 = vadd.f32 0.0, %v1784
        %1786 = vdwg.mxu0
        %v1787 = vadd.f32 %v1714, %v1755
        %v1788 = vadd.f32 %v1715, %v1769
        %v1789 = vadd.f32 %v1716, %v1783
        %v1790 = vadd.f32 %v1717, %v1757
        %v1791 = vadd.f32 %v1718, %v1771
        %v1792 = vadd.f32 %v1719, %v1785
        %s1793 = scalar_lea.vmem [#allocation9], 48
        %v1794 = vld [vmem:[%s1793] sm:$0xf]
        %v1795 = vld [vmem:[%s1793 + $0x4] sm:$0xf]
        %v1798 = vunpack.c.l.b16 %v1794
        %v1799 = vunpack.c.l.b16 %v1795
        %v1800 = vpack.c.b16 %v1799, %v1798
        %1801 = vrot.lane.b32.xlu0 %v1372, 92
        %v1802 = vpop.permute.xlu0 %1801
        %1803 = vrot.lane.b32.xlu0 %v1373, 92
        %v1804 = vpop.permute.xlu0 %1803
        %1805 = vrot.lane.b32.xlu0 %v1374, 92
        %v1806 = vpop.permute.xlu0 %1805
        %1807 = vrot.lane.b32.xlu0 %v1375, 92
        %v1808 = vpop.permute.xlu0 %1807
        %v1809 = vsel %vm1038, %v1802, %v1804
        %v1810 = vsel %vm1038, %v1804, %v1806
        %v1811 = vsel %vm1038, %v1806, %v1808
        %v1816 = vsel %vm500, %v1800, 0
        %1818 = vmatpush.bf16.msra.mxu0 0
        %1819 = vmatpush.bf16.msra.mxu0 0
        %1820 = vmatpush.bf16.msra.mxu0 0
        %1821 = vmatpush.bf16.msra.mxu0 0
        %1822 = vmatpush.bf16.msra.mxu0 0
        %1823 = vmatpush.bf16.msra.mxu0 0
        %1824 = vmatpush.bf16.msra.mxu0 0
        %1825 = vmatpush.bf16.msra.mxu0 %v1809
        %1826 = vmatmul.bf16.gmra.mxu0 %v1816
        %v1827 = vpop.f32.mrf.mxu0
        %v1828 = vadd.f32 0.0, %v1827
        %v1829 = vpop.f32.mrf.mxu0
        %v1830 = vadd.f32 0.0, %v1829
        %1831 = vdwg.mxu0
        %1832 = vmatpush.bf16.msra.mxu0 0
        %1833 = vmatpush.bf16.msra.mxu0 0
        %1834 = vmatpush.bf16.msra.mxu0 0
        %1835 = vmatpush.bf16.msra.mxu0 0
        %1836 = vmatpush.bf16.msra.mxu0 0
        %1837 = vmatpush.bf16.msra.mxu0 0
        %1838 = vmatpush.bf16.msra.mxu0 0
        %1839 = vmatpush.bf16.msra.mxu0 %v1810
        %1840 = vmatmul.bf16.gmra.mxu0 %v1816
        %v1841 = vpop.f32.mrf.mxu0
        %v1842 = vadd.f32 0.0, %v1841
        %v1843 = vpop.f32.mrf.mxu0
        %v1844 = vadd.f32 0.0, %v1843
        %1845 = vdwg.mxu0
        %1846 = vmatpush.bf16.msra.mxu0 0
        %1847 = vmatpush.bf16.msra.mxu0 0
        %1848 = vmatpush.bf16.msra.mxu0 0
        %1849 = vmatpush.bf16.msra.mxu0 0
        %1850 = vmatpush.bf16.msra.mxu0 0
        %1851 = vmatpush.bf16.msra.mxu0 0
        %1852 = vmatpush.bf16.msra.mxu0 0
        %1853 = vmatpush.bf16.msra.mxu0 %v1811
        %1854 = vmatmul.bf16.gmra.mxu0 %v1816
        %v1855 = vpop.f32.mrf.mxu0
        %v1856 = vadd.f32 0.0, %v1855
        %v1857 = vpop.f32.mrf.mxu0
        %v1858 = vadd.f32 0.0, %v1857
        %1859 = vdwg.mxu0
        %v1860 = vadd.f32 %v1787, %v1828
        %v1861 = vadd.f32 %v1788, %v1842
        %v1862 = vadd.f32 %v1789, %v1856
        %v1863 = vadd.f32 %v1790, %v1830
        %v1864 = vadd.f32 %v1791, %v1844
        %v1865 = vadd.f32 %v1792, %v1858
        %s1866 = scalar_lea.vmem [#allocation9], 56
        %v1867 = vld [vmem:[%s1866] sm:$0xf]
        %v1868 = vld [vmem:[%s1866 + $0x4] sm:$0xf]
        %v1871 = vunpack.c.l.b16 %v1867
        %v1872 = vunpack.c.l.b16 %v1868
        %v1873 = vpack.c.b16 %v1872, %v1871
        %1874 = vrot.lane.b32.xlu0 %v1372, 91
        %v1875 = vpop.permute.xlu0 %1874
        %1876 = vrot.lane.b32.xlu0 %v1373, 91
        %v1877 = vpop.permute.xlu0 %1876
        %1878 = vrot.lane.b32.xlu0 %v1374, 91
        %v1879 = vpop.permute.xlu0 %1878
        %1880 = vrot.lane.b32.xlu0 %v1375, 91
        %v1881 = vpop.permute.xlu0 %1880
        %v1882 = vsel %vm1132, %v1875, %v1877
        %v1883 = vsel %vm1132, %v1877, %v1879
        %v1884 = vsel %vm1132, %v1879, %v1881
        %v1889 = vsel %vm500, %v1873, 0
        %1891 = vmatpush.bf16.msra.mxu0 0
        %1892 = vmatpush.bf16.msra.mxu0 0
        %1893 = vmatpush.bf16.msra.mxu0 0
        %1894 = vmatpush.bf16.msra.mxu0 0
        %1895 = vmatpush.bf16.msra.mxu0 0
        %1896 = vmatpush.bf16.msra.mxu0 0
        %1897 = vmatpush.bf16.msra.mxu0 0
        %1898 = vmatpush.bf16.msra.mxu0 %v1882
        %1899 = vmatmul.bf16.gmra.mxu0 %v1889
        %v1900 = vpop.f32.mrf.mxu0
        %v1901 = vadd.f32 0.0, %v1900
        %v1902 = vpop.f32.mrf.mxu0
        %v1903 = vadd.f32 0.0, %v1902
        %1904 = vdwg.mxu0
        %1905 = vmatpush.bf16.msra.mxu0 0
        %1906 = vmatpush.bf16.msra.mxu0 0
        %1907 = vmatpush.bf16.msra.mxu0 0
        %1908 = vmatpush.bf16.msra.mxu0 0
        %1909 = vmatpush.bf16.msra.mxu0 0
        %1910 = vmatpush.bf16.msra.mxu0 0
        %1911 = vmatpush.bf16.msra.mxu0 0
        %1912 = vmatpush.bf16.msra.mxu0 %v1883
        %1913 = vmatmul.bf16.gmra.mxu0 %v1889
        %v1914 = vpop.f32.mrf.mxu0
        %v1915 = vadd.f32 0.0, %v1914
        %v1916 = vpop.f32.mrf.mxu0
        %v1917 = vadd.f32 0.0, %v1916
        %1918 = vdwg.mxu0
        %1919 = vmatpush.bf16.msra.mxu0 0
        %1920 = vmatpush.bf16.msra.mxu0 0
        %1921 = vmatpush.bf16.msra.mxu0 0
        %1922 = vmatpush.bf16.msra.mxu0 0
        %1923 = vmatpush.bf16.msra.mxu0 0
        %1924 = vmatpush.bf16.msra.mxu0 0
        %1925 = vmatpush.bf16.msra.mxu0 0
        %1926 = vmatpush.bf16.msra.mxu0 %v1884
        %1927 = vmatmul.bf16.gmra.mxu0 %v1889
        %v1928 = vpop.f32.mrf.mxu0
        %v1929 = vadd.f32 0.0, %v1928
        %v1930 = vpop.f32.mrf.mxu0
        %v1931 = vadd.f32 0.0, %v1930
        %1932 = vdwg.mxu0
        %v1933 = vadd.f32 %v1860, %v1901
        %v1934 = vadd.f32 %v1861, %v1915
        %v1935 = vadd.f32 %v1862, %v1929
        %v1936 = vadd.f32 %v1863, %v1903
        %v1937 = vadd.f32 %v1864, %v1917
        %v1938 = vadd.f32 %v1865, %v1931
        %s1939 = scalar_lea.vmem [#allocation9], 64
        %v1940 = vld [vmem:[%s1939] sm:$0xf]
        %v1941 = vld [vmem:[%s1939 + $0x4] sm:$0xf]
        %v1944 = vunpack.c.l.b16 %v1940
        %v1945 = vunpack.c.l.b16 %v1941
        %v1946 = vpack.c.b16 %v1945, %v1944
        %1947 = vrot.lane.b32.xlu0 %v1372, 90
        %v1948 = vpop.permute.xlu0 %1947
        %1949 = vrot.lane.b32.xlu0 %v1373, 90
        %v1950 = vpop.permute.xlu0 %1949
        %1951 = vrot.lane.b32.xlu0 %v1374, 90
        %v1952 = vpop.permute.xlu0 %1951
        %1953 = vrot.lane.b32.xlu0 %v1375, 90
        %v1954 = vpop.permute.xlu0 %1953
        %v1955 = vsel %vm1226, %v1948, %v1950
        %v1956 = vsel %vm1226, %v1950, %v1952
        %v1957 = vsel %vm1226, %v1952, %v1954
        %v1962 = vsel %vm500, %v1946, 0
        %1964 = vmatpush.bf16.msra.mxu0 0
        %1965 = vmatpush.bf16.msra.mxu0 0
        %1966 = vmatpush.bf16.msra.mxu0 0
        %1967 = vmatpush.bf16.msra.mxu0 0
        %1968 = vmatpush.bf16.msra.mxu0 0
        %1969 = vmatpush.bf16.msra.mxu0 0
        %1970 = vmatpush.bf16.msra.mxu0 0
        %1971 = vmatpush.bf16.msra.mxu0 %v1955
        %1972 = vmatmul.bf16.gmra.mxu0 %v1962
        %v1973 = vpop.f32.mrf.mxu0
        %v1974 = vadd.f32 0.0, %v1973
        %v1975 = vpop.f32.mrf.mxu0
        %v1976 = vadd.f32 0.0, %v1975
        %1977 = vdwg.mxu0
        %1978 = vmatpush.bf16.msra.mxu0 0
        %1979 = vmatpush.bf16.msra.mxu0 0
        %1980 = vmatpush.bf16.msra.mxu0 0
        %1981 = vmatpush.bf16.msra.mxu0 0
        %1982 = vmatpush.bf16.msra.mxu0 0
        %1983 = vmatpush.bf16.msra.mxu0 0
        %1984 = vmatpush.bf16.msra.mxu0 0
        %1985 = vmatpush.bf16.msra.mxu0 %v1956
        %1986 = vmatmul.bf16.gmra.mxu0 %v1962
        %v1987 = vpop.f32.mrf.mxu0
        %v1988 = vadd.f32 0.0, %v1987
        %v1989 = vpop.f32.mrf.mxu0
        %v1990 = vadd.f32 0.0, %v1989
        %1991 = vdwg.mxu0
        %1992 = vmatpush.bf16.msra.mxu0 0
        %1993 = vmatpush.bf16.msra.mxu0 0
        %1994 = vmatpush.bf16.msra.mxu0 0
        %1995 = vmatpush.bf16.msra.mxu0 0
        %1996 = vmatpush.bf16.msra.mxu0 0
        %1997 = vmatpush.bf16.msra.mxu0 0
        %1998 = vmatpush.bf16.msra.mxu0 0
        %1999 = vmatpush.bf16.msra.mxu0 %v1957
        %2000 = vmatmul.bf16.gmra.mxu0 %v1962
        %v2001 = vpop.f32.mrf.mxu0
        %v2002 = vadd.f32 0.0, %v2001
        %v2003 = vpop.f32.mrf.mxu0
        %v2004 = vadd.f32 0.0, %v2003
        %2005 = vdwg.mxu0
        %v2006 = vadd.f32 %v1933, %v1974
        %v2007 = vadd.f32 %v1934, %v1988
        %v2008 = vadd.f32 %v1935, %v2002
        %v2009 = vadd.f32 %v1936, %v1976
        %v2010 = vadd.f32 %v1937, %v1990
        %v2011 = vadd.f32 %v1938, %v2004
        %v2012 = vld [vmem:[%s315] sm:$0xff]
        %v2013 = vld [vmem:[%s315 + $0x8] sm:$0xff]
        %v2014 = vld [vmem:[%s315 + $0x10] sm:$0xff]
        %v2015 = vld [vmem:[%s315 + $0x18] sm:$0xff]
        %v2016 = vld [vmem:[%s315 + $0x28] sm:$0xff]
        %v2017 = vld [vmem:[%s315 + $0x30] sm:$0xff]
        %v2018 = vld [vmem:[%s315 + $0x38] sm:$0xff]
        %v2019 = vld [vmem:[%s315 + $0x40] sm:$0xff]
        %v2020 = vmul.f32 %v2006, %v399
        %v2021 = vmul.f32 %v2007, %v399
        %v2022 = vmul.f32 %v2008, %v399
        %v2023 = vmul.f32 %v2009, %v404
        %v2024 = vmul.f32 %v2010, %v404
        %v2025 = vmul.f32 %v2011, %v404
        %v2026 = vadd.f32 %v2020, %v411
        %v2027 = vadd.f32 %v2021, %v411
        %v2028 = vadd.f32 %v2022, %v411
        %v2029 = vadd.f32 %v2023, %v416
        %v2030 = vadd.f32 %v2024, %v416
        %v2031 = vadd.f32 %v2025, %v416
        %2040 = vrot.lane.b32.xlu0 %v2012, 90
        %v2041 = vpop.permute.xlu0 %2040
        %2042 = vrot.lane.b32.xlu0 %v2013, 90
        %v2043 = vpop.permute.xlu0 %2042
        %2044 = vrot.lane.b32.xlu0 %v2014, 90
        %v2045 = vpop.permute.xlu0 %2044
        %2046 = vrot.lane.b32.xlu0 %v2015, 90
        %v2047 = vpop.permute.xlu0 %2046
        %2048 = vrot.lane.b32.xlu0 %v2016, 90
        %v2049 = vpop.permute.xlu0 %2048
        %2050 = vrot.lane.b32.xlu0 %v2017, 90
        %v2051 = vpop.permute.xlu0 %2050
        %2052 = vrot.lane.b32.xlu0 %v2018, 90
        %v2053 = vpop.permute.xlu0 %2052
        %2054 = vrot.lane.b32.xlu0 %v2019, 90
        %v2055 = vpop.permute.xlu0 %2054
        %vm2056 = vcmask 736256
        %v2057 = vsel %vm2056, %v2041, %v2043
        %v2058 = vsel %vm2056, %v2043, %v2045
        %v2059 = vsel %vm2056, %v2045, %v2047
        %v2060 = vsel %vm2056, %v2049, %v2051
        %v2061 = vsel %vm2056, %v2051, %v2053
        %v2062 = vsel %vm2056, %v2053, %v2055
        %v2069 = vadd.f32 %v2026, %v2057
        %v2070 = vadd.f32 %v2027, %v2058
        %v2071 = vadd.f32 %v2028, %v2059
        %v2072 = vadd.f32 %v2029, %v2060
        %v2073 = vadd.f32 %v2030, %v2061
        %v2074 = vadd.f32 %v2031, %v2062
        %v2075 = vmax.f32 %v2069, 0.0
        %v2076 = vmax.f32 %v2070, 0.0
        %v2077 = vmax.f32 %v2071, 0.0
        %v2078 = vmax.f32 %v2072, 0.0
        %v2079 = vmax.f32 %v2073, 0.0
        %v2080 = vmax.f32 %v2074, 0.0
        %2081 = vst [vmem:[%s358] sm:$0xff] %v2075
        %2082 = vst [vmem:[%s358 + $0x8] sm:$0xff] %v2076
        %2083 = vst [vmem:[%s358 + $0x10] sm:$0xff] %v2077
        %2084 = vst [vmem:[%s358 + $0x18] sm:$0xff] %v2078
        %2085 = vst [vmem:[%s358 + $0x20] sm:$0xff] %v2079
        %2086 = vst [vmem:[%s358 + $0x28] sm:$0xff] %v2080
        %s2087 = sand.u32 %s207, 1
        %s2088 = scalar_lea.sflag [#allocation6], %s2087
        %s2089 = sand.u32 %s207, 1
        %s2090 = smul.addr %s2089, 48
        %s2091 = scalar_lea.vmem [#allocation10], %s2090
        // Predicated region
        $region65: #{tpu_custom_call.1} parent=51 // pred_check
          %p2092 = pneg %p217
        $region66: #{tpu_custom_call.1} parent=51 // pred_check_branch
          %2094 = sbr.rel (%p2092) target = $region68
        $region67: #{tpu_custom_call.1} parent=51 // pred_region
          %2096 = vsyncadd %s2088, 0
          %s2097 = smul.addr %s26, 6
          %s2098 = smul.addr %s2097, 8
          %s2099 = scalar_lea.hbm %s8, %s2098
          %s2100 = sshll.u32 %s2091, 4
          %s2101 = int_to_ptr.vmem [resolvable:$true] %s2100
          %s2102 = sshll.u32 %s2099, 4
          %s2103 = int_to_ptr.hbm [resolvable:$true] %s2102
          %2108 = dma.vmem_to_hbm [thread:$0]  %s2101, 768, %s2103, %s2088, 384, 384, 24
        $region68: #{tpu_custom_call.1} parent=51 // pred_fallthru
          _
      $region52: #{tpu_custom_call.1} parent=5 // pred_fallthru
        _
      %p2109 = scmp.le.s32.totalorder 2, %s21
      // Predicated region
      $region69: #{tpu_custom_call.1} parent=5 // pred_check
        %p2110 = pneg %p2109
      $region70: #{tpu_custom_call.1} parent=5 // pred_check_branch
        %2112 = sbr.rel (%p2110) target = $region72
      $region71: #{tpu_custom_call.1} parent=5 // pred_region
        %s2113 = ssub.s32 %s21, 2
        // Predicated region
        $region73: #{tpu_custom_call.1} parent=71 // pred_check
          %p2114 = pneg %p223
        $region74: #{tpu_custom_call.1} parent=71 // pred_check_branch
          %2116 = sbr.rel (%p2114) target = $region76
        $region75: #{tpu_custom_call.1} parent=71 // pred_region
          %s2117 = sand.u32 %s208, 1
          %s2118 = scalar_lea.sflag [#allocation6], %s2117
          %s2119 = sand.u32 %s208, 1
          %s2120 = smul.addr %s2119, 48
          %s2121 = scalar_lea.vmem [#allocation10], %s2120
          %2123 = dma.done %s2118, 768
        $region76: #{tpu_custom_call.1} parent=71 // pred_fallthru
          _
      $region72: #{tpu_custom_call.1} parent=5 // pred_fallthru
        _
    $region6: #{tpu_custom_call.1} parent=1 // loop_footer
      %s25 = sadd.s32 1, %s21
    $region7: #{tpu_custom_call.1} parent=1 // loop_footer_branch
      %20 = sbr.rel target = $region3
    $region8: #{tpu_custom_call.1} parent=1 // loop_exit
      _
    %2124 = vsyncpa [#allocation5], 1
    %s2125 = scalar_lea.sflag [#allocation5], 1
    %2126 = vsyncpa %s2125, 1
    %2127 = vsyncpa [#allocation8], 1
    %2128 = vsyncpa [#allocation6], 1
    %s2129 = scalar_lea.sflag [#allocation6], 1
    %2130 = vsyncpa %s2129, 1

</llo_original>
